<compile_context>
chip_gen: v6e
topology: v6e:2x2x1
jax: 0.10.0
libtpu: 0.0.40
codegen_flags: <defaults>
</compile_context>

<pallas_src>
import numpy as np

import jax
import jax.numpy as jnp
from jax import lax
from jax.experimental import pallas as pl
from jax.experimental.pallas import tpu as pltpu

DIM = 32
LAYER_GNN = 3
LAYER_CNN = 3
LAYER_OUT = 3
WINDOW = 2
KSIZE = 2 * WINDOW + 1

MAX_ATOMS = 16        # bucket size for atoms  (multiple of 8)
MAX_WORDS = 16        # bucket size for words  (multiple of 8)
PAD_ROWS = 8          # halo allocation rounding for the CNN scratch
LANE_OUT = 128        # lane-dense per-sample output row

# TODO(synk): multiple (MAX_ATOMS, MAX_WORDS) buckets for widely varying
#             sequence lengths; a single bucket is used here.


# ---------------------------------------------------------------------------
# Host-side weight preprocessing: fold the lane-axis conv taps into banded
# [dim, dim] matrices and concatenate the KSIZE taps along K, giving one
# [KSIZE*dim, dim] matrix per layer.  With rows zero-padded by WINDOW,
#   conv_out[i,:] = concat_dy(x_pad[i+dy, :]) @ W_band[l]
# which is exactly Conv2d(kernel=K, padding=W) (PyTorch cross-correlation).
# ---------------------------------------------------------------------------
def build_conv_band_matrices(Wc):
    ci = jnp.arange(DIM)[:, None]
    co = jnp.arange(DIM)[None, :]
    dx = ci - co + WINDOW                                    # [dim, dim]
    mask = (dx >= 0) & (dx < KSIZE)
    dxc = jnp.clip(dx, 0, KSIZE - 1)
    band = jnp.where(mask[None, None], Wc[:, :, dxc], 0.0)   # [L, K, dim, dim]
    return band.reshape(LAYER_CNN, KSIZE * DIM, DIM)         # [L, K*dim, dim]


# ---------------------------------------------------------------------------
# Fused per-sample kernel (one grid step == one sample).  Everything lives in
# VMEM/vregs; the only HBM write is the 128-lane broadcast of the result.
# ---------------------------------------------------------------------------
def _fused_kernel(natoms_ref, nwords_ref,                  # scalar prefetch (SMEM)
                  fp_ref, adj_ref, word_ref,               # per-sample inputs
                  wg_ref, bg_ref,                          # GNN weights
                  convw_ref, convb_ref,                    # CNN band weights / SMEM bias
                  wa_ref, ba_ref,                          # attention weights
                  wo_ref, bo_ref,                          # output head weights
                  wi_ref, bi_ref,                          # interaction weights / SMEM bias
                  out_ref,
                  pad_ref):                                 # CNN halo scratch
    b = pl.program_id(0)
    n_atoms_f = natoms_ref[b].astype(jnp.float32)
    n_words = nwords_ref[b]
    n_words_f = n_words.astype(jnp.float32)

    # ---- GNN: xs = xs + A @ relu(xs @ Wg + bg), 3 layers; masked mean ----
    xs = fp_ref[0]                                           # [MA, dim] (pad rows zero)
    adj = adj_ref[0]                                         # [MA, MA]  (pad rows/cols zero)
    for i in range(LAYER_GNN):                               # static unroll
        h = jnp.maximum(
            jnp.dot(xs, wg_ref[i], preferred_element_type=jnp.float32) + bg_ref[i],
            0.0)
        xs = xs + jnp.dot(adj, h, preferred_element_type=jnp.float32)
    compound = jnp.sum(xs, axis=0, keepdims=True) / n_atoms_f   # [1, dim]

    # ---- CNN: 3 x relu(conv2d_same(x) + b), one fused K=KSIZE*dim matmul/layer ----
    row_idx = lax.broadcasted_iota(jnp.int32, (MAX_WORDS, DIM), 0)
    word_valid = row_idx < n_words
    pad_ref[...] = jnp.zeros_like(pad_ref)                   # halo rows stay zero
    x = word_ref[0]                                          # [MW, dim] (pad rows zero)
    for l in range(LAYER_CNN):                               # static unroll
        pad_ref[WINDOW:WINDOW + MAX_WORDS, :] = x            # middle rows only
        taps = [pad_ref[dy:dy + MAX_WORDS, :] for dy in range(KSIZE)]
        lhs = jnp.concatenate(taps, axis=-1)                 # [MW, K*dim]
        x = jnp.maximum(
            jnp.dot(lhs, convw_ref[l], preferred_element_type=jnp.float32)
            + convb_ref[l],                                  # SMEM scalar bias
            0.0)
        x = jnp.where(word_valid, x, 0.0)                    # re-zero padded rows

    # ---- Attention over CNN output ----
    wa = wa_ref[...]
    ba = ba_ref[...]                                         # [1, dim]
    h = jnp.maximum(
        jnp.dot(compound, wa, preferred_element_type=jnp.float32) + ba, 0.0)
    hs = jnp.maximum(
        jnp.dot(x, wa, preferred_element_type=jnp.float32) + ba, 0.0)
    scores = jnp.sum(hs * h, axis=-1, keepdims=True)         # == (h @ hs.T).T
    ys = jnp.where(word_valid, jnp.tanh(scores) * hs, 0.0)   # mask padded rows
    protein = jnp.sum(ys, axis=0, keepdims=True) / n_words_f  # [1, dim]

    # ---- Output head: concat removed by splitting the first layer weight ----
    v = jnp.maximum(
        jnp.dot(compound, wo_ref[0, :DIM, :], preferred_element_type=jnp.float32)
        + jnp.dot(protein, wo_ref[0, DIM:, :], preferred_element_type=jnp.float32)
        + bo_ref[0], 0.0)
    for j in range(1, LAYER_OUT):
        v = jnp.maximum(
            jnp.dot(v, wo_ref[j], preferred_element_type=jnp.float32) + bo_ref[j],
            0.0)
    # final Linear(2dim -> 1): elementwise-mul + lane reduction; lane-dense store
    res = jnp.sum(v * wi_ref[...], axis=-1, keepdims=True) + bi_ref[0]   # [1, 1]
    out_ref[...] = jnp.broadcast_to(res.reshape(1, 1, 1), (1, 1, LANE_OUT))


def _make_pallas_call(batch):
    grid_spec = pltpu.PrefetchScalarGridSpec(
        num_scalar_prefetch=2,                               # n_atoms[B], n_words[B]
        grid=(batch,),
        in_specs=[
            pl.BlockSpec((1, MAX_ATOMS, DIM), lambda b, na, nw: (b, 0, 0)),
            pl.BlockSpec((1, MAX_ATOMS, MAX_ATOMS), lambda b, na, nw: (b, 0, 0)),
            pl.BlockSpec((1, MAX_WORDS, DIM), lambda b, na, nw: (b, 0, 0)),
            pl.BlockSpec((LAYER_GNN, DIM, DIM), lambda b, na, nw: (0, 0, 0)),
            pl.BlockSpec((LAYER_GNN, 1, DIM), lambda b, na, nw: (0, 0, 0)),
            pl.BlockSpec((LAYER_CNN, KSIZE * DIM, DIM), lambda b, na, nw: (0, 0, 0)),
            pl.BlockSpec(memory_space=pltpu.MemorySpace.SMEM),   # conv bias [L]
            pl.BlockSpec((DIM, DIM), lambda b, na, nw: (0, 0)),
            pl.BlockSpec((1, DIM), lambda b, na, nw: (0, 0)),
            pl.BlockSpec((LAYER_OUT, 2 * DIM, 2 * DIM), lambda b, na, nw: (0, 0, 0)),
            pl.BlockSpec((LAYER_OUT, 1, 2 * DIM), lambda b, na, nw: (0, 0, 0)),
            pl.BlockSpec((1, 2 * DIM), lambda b, na, nw: (0, 0)),
            pl.BlockSpec(memory_space=pltpu.MemorySpace.SMEM),   # bi [1]
        ],
        out_specs=pl.BlockSpec((1, 1, LANE_OUT), lambda b, na, nw: (b, 0, 0)),
        scratch_shapes=[
            pltpu.VMEM((MAX_WORDS + PAD_ROWS, DIM), jnp.float32),  # CNN halo buffer
        ],
    )
    return pl.pallas_call(
        _fused_kernel,
        out_shape=jax.ShapeDtypeStruct((batch, 1, LANE_OUT), jnp.float32),
        grid_spec=grid_spec,
        compiler_params=pltpu.CompilerParams(
            dimension_semantics=("parallel",)),              # megacore on v7x
    )


# ---------------------------------------------------------------------------
# Batched forward: embedding gathers and padding masks are XLA glue (fused
# under jit); everything else is the single batched pallas_call.
# ---------------------------------------------------------------------------
@jax.jit
def kcat_forward(params, fingerprints, adjacency, words, n_atoms, n_words):
    batch = fingerprints.shape[0]
    fp_vec = params["embed_fp"][fingerprints]                # [B, MA, dim]
    word_vec = params["embed_word"][words]                   # [B, MW, dim]

    atom_valid = jnp.arange(MAX_ATOMS)[None, :] < n_atoms[:, None]   # [B, MA]
    word_valid = jnp.arange(MAX_WORDS)[None, :] < n_words[:, None]   # [B, MW]
    fp_vec = jnp.where(atom_valid[..., None], fp_vec, 0.0)
    word_vec = jnp.where(word_valid[..., None], word_vec, 0.0)
    amask = atom_valid.astype(adjacency.dtype)
    adj = adjacency * amask[:, :, None] * amask[:, None, :]

    out = _make_pallas_call(batch)(
        n_atoms.astype(jnp.int32), n_words.astype(jnp.int32),
        fp_vec, adj, word_vec,
        params["Wg"], params["bg"],
        params["conv_band"], params["conv_bias"],
        params["Wa"], params["ba"],
        params["Wo"], params["bo"],
        params["Wi_t"], params["bi"])
    return out[:, 0, :1]                                     # [B, 1]


# ---------------------------------------------------------------------------
# Pure NumPy reference of the original PyTorch module (single sample).
# ---------------------------------------------------------------------------
def reference_forward_np(params, Wc, fp_idx, adj, word_idx):
    p = {k: np.asarray(v) for k, v in params.items()}
    Wc = np.asarray(Wc)
    relu = lambda a: np.maximum(a, 0.0)

    xs = p["embed_fp"][fp_idx]
    for i in range(LAYER_GNN):
        h = relu(xs @ p["Wg"][i] + p["bg"][i])
        xs = xs + adj @ h
    compound = xs.mean(axis=0, keepdims=True)

    x = p["embed_word"][word_idx]
    n = x.shape[0]
    for l in range(LAYER_CNN):
        xp = np.pad(x, ((WINDOW, WINDOW), (WINDOW, WINDOW)))
        acc = np.zeros_like(x)
        for dy in range(KSIZE):
            for dx in range(KSIZE):
                acc = acc + Wc[l, dy, dx] * xp[dy:dy + n, dx:dx + DIM]
        x = relu(acc + p["conv_bias"][l])

    h = relu(compound @ p["Wa"] + p["ba"])
    hs = relu(x @ p["Wa"] + p["ba"])
    weights = np.tanh(h @ hs.T)                              # [1, n]
    ys = weights.T * hs
    protein = ys.mean(axis=0, keepdims=True)

    cat = np.concatenate([compound, protein], axis=1)
    for j in range(LAYER_OUT):
        cat = relu(cat @ p["Wo"][j] + p["bo"][j])
    return float((cat * p["Wi_t"]).sum() + p["bi"][0])


if __name__ == "__main__":
    key = jax.random.PRNGKey(0)
    keys = jax.random.split(key, 16)

    n_fingerprint, n_word = 20, 30
    B = 4
    n_atoms = jnp.array([8, 11, 5, 16], dtype=jnp.int32)     # true lengths (<= MAX_ATOMS)
    n_words = jnp.array([10, 7, 16, 12], dtype=jnp.int32)    # true lengths (<= MAX_WORDS)
    s = 0.1                                                  # small deterministic init

    Wc = s * jax.random.normal(keys[4], (LAYER_CNN, KSIZE, KSIZE), jnp.float32)

    params = {
        "embed_fp":   s * jax.random.normal(keys[0], (n_fingerprint, DIM), jnp.float32),
        "embed_word": s * jax.random.normal(keys[1], (n_word, DIM), jnp.float32),
        "Wg": s * jax.random.normal(keys[2], (LAYER_GNN, DIM, DIM), jnp.float32),
        "bg": s * jax.random.normal(keys[3], (LAYER_GNN, 1, DIM), jnp.float32),
        "conv_band": build_conv_band_matrices(Wc),           # [L, K*dim, dim]
        "conv_bias": s * jax.random.normal(keys[5], (LAYER_CNN,), jnp.float32),
        "Wa": s * jax.random.normal(keys[6], (DIM, DIM), jnp.float32),
        "ba": s * jax.random.normal(keys[7], (1, DIM), jnp.float32),
        "Wo": s * jax.random.normal(keys[8], (LAYER_OUT, 2 * DIM, 2 * DIM), jnp.float32),
        "bo": s * jax.random.normal(keys[9], (LAYER_OUT, 1, 2 * DIM), jnp.float32),
        "Wi_t": s * jax.random.normal(keys[10], (1, 2 * DIM), jnp.float32),
        "bi":   s * jax.random.normal(keys[11], (1,), jnp.float32),
    }

    # Padded batched inputs; padded index/adjacency entries are junk on purpose
    # (the wrapper + kernel masking must neutralize them).
    fingerprints = jax.random.randint(keys[12], (B, MAX_ATOMS), 0, n_fingerprint)
    words = jax.random.randint(keys[13], (B, MAX_WORDS), 0, n_word)
    adjacency = (jax.random.uniform(keys[14], (B, MAX_ATOMS, MAX_ATOMS)) < 0.3
                 ).astype(jnp.float32)

    interaction = kcat_forward(params, fingerprints, adjacency, words,
                               n_atoms, n_words)
    jax.block_until_ready(interaction)
    assert interaction.shape == (B, 1)

    # Per-sample NumPy reference on the true (unpadded) lengths.
    fp_np, adj_np, wd_np = (np.asarray(fingerprints), np.asarray(adjacency),
                            np.asarray(words))
    ref = np.array([
        reference_forward_np(
            params, Wc,
            fp_np[b, :int(n_atoms[b])],
            adj_np[b, :int(n_atoms[b]), :int(n_atoms[b])],
            wd_np[b, :int(n_words[b])],
        ) for b in range(B)
    ], dtype=np.float32).reshape(B, 1)
    np.testing.assert_allclose(np.asarray(interaction), ref, rtol=5e-2, atol=5e-3)

    print("KERNEL_OK")
</pallas_src>

<mosaic_0001>
module attributes {stable_mosaic.version = 11 : i64} {
  func.func @_fused_kernel(%arg0: i32, %arg1: memref<4xi32, #tpu.memory_space<smem>>, %arg2: memref<4xi32, #tpu.memory_space<smem>>, %arg3: memref<1x16x32xf32, #tpu.memory_space<vmem>>, %arg4: memref<1x16x16xf32, #tpu.memory_space<vmem>>, %arg5: memref<1x16x32xf32, #tpu.memory_space<vmem>>, %arg6: memref<3x32x32xf32, #tpu.memory_space<vmem>>, %arg7: memref<3x1x32xf32, #tpu.memory_space<vmem>>, %arg8: memref<3x160x32xf32, #tpu.memory_space<vmem>>, %arg9: memref<3xf32, #tpu.memory_space<smem>>, %arg10: memref<32x32xf32, #tpu.memory_space<vmem>>, %arg11: memref<1x32xf32, #tpu.memory_space<vmem>>, %arg12: memref<3x64x64xf32, #tpu.memory_space<vmem>>, %arg13: memref<3x1x64xf32, #tpu.memory_space<vmem>>, %arg14: memref<1x64xf32, #tpu.memory_space<vmem>>, %arg15: memref<1xf32, #tpu.memory_space<smem>>, %arg16: memref<1x1x128xf32, #tpu.memory_space<vmem>>, %arg17: memref<24x32xf32, #tpu.memory_space<vmem>>) attributes {dimension_semantics = [#tpu.dimension_semantics<parallel>], iteration_bounds = array<i64: 4>, scalar_prefetch = 2 : i64, scratch_operands = 1 : i64, tpu.core_type = #tpu.core_type<tc>, window_params = [{transform_indices = @transform_0, window_bounds = array<i64: 1, 16, 32>}, {transform_indices = @transform_1, window_bounds = array<i64: 1, 16, 16>}, {transform_indices = @transform_2, window_bounds = array<i64: 1, 16, 32>}, {pipeline_mode = #tpu.pipeline_mode<synchronous>, transform_indices = @transform_3, window_bounds = array<i64: 3, 32, 32>}, {pipeline_mode = #tpu.pipeline_mode<synchronous>, transform_indices = @transform_4, window_bounds = array<i64: 3, 1, 32>}, {pipeline_mode = #tpu.pipeline_mode<synchronous>, transform_indices = @transform_5, window_bounds = array<i64: 3, 160, 32>}, {transform_indices = @transform_6, window_bounds = array<i64: 3>}, {pipeline_mode = #tpu.pipeline_mode<synchronous>, transform_indices = @transform_7, window_bounds = array<i64: 32, 32>}, {pipeline_mode = #tpu.pipeline_mode<synchronous>, transform_indices = @transform_8, window_bounds = array<i64: 1, 32>}, {pipeline_mode = #tpu.pipeline_mode<synchronous>, transform_indices = @transform_9, window_bounds = array<i64: 3, 64, 64>}, {pipeline_mode = #tpu.pipeline_mode<synchronous>, transform_indices = @transform_10, window_bounds = array<i64: 3, 1, 64>}, {pipeline_mode = #tpu.pipeline_mode<synchronous>, transform_indices = @transform_11, window_bounds = array<i64: 1, 64>}, {transform_indices = @transform_12, window_bounds = array<i64: 1>}, {transform_indices = @transform_13, window_bounds = array<i64: 1, 1, 128>}]} {
    %0 = arith.index_cast %arg0 : i32 to index
    %1 = memref.load %arg1[%0] : memref<4xi32, #tpu.memory_space<smem>>
    %2 = arith.sitofp %1 : i32 to f32
    %3 = arith.index_cast %arg0 : i32 to index
    %4 = memref.load %arg2[%3] : memref<4xi32, #tpu.memory_space<smem>>
    %5 = arith.sitofp %4 : i32 to f32
    %c0 = arith.constant 0 : index
    %c0_0 = arith.constant 0 : index
    %c0_1 = arith.constant 0 : index
    %6 = vector.load %arg3[%c0, %c0_0, %c0_1] : memref<1x16x32xf32, #tpu.memory_space<vmem>>, vector<1x16x32xf32>
    %7 = vector.shape_cast %6 : vector<1x16x32xf32> to vector<16x32xf32>
    %c0_2 = arith.constant 0 : index
    %c0_3 = arith.constant 0 : index
    %c0_4 = arith.constant 0 : index
    %8 = vector.load %arg4[%c0_2, %c0_3, %c0_4] : memref<1x16x16xf32, #tpu.memory_space<vmem>>, vector<1x16x16xf32>
    %9 = vector.shape_cast %8 : vector<1x16x16xf32> to vector<16x16xf32>
    %c0_5 = arith.constant 0 : index
    %c0_6 = arith.constant 0 : index
    %c0_7 = arith.constant 0 : index
    %10 = vector.load %arg6[%c0_5, %c0_6, %c0_7] : memref<3x32x32xf32, #tpu.memory_space<vmem>>, vector<1x32x32xf32>
    %11 = vector.shape_cast %10 : vector<1x32x32xf32> to vector<32x32xf32>
    %cst = arith.constant dense<0.000000e+00> : vector<16x32xf32>
    %12 = tpu.matmul %7, %11, %cst {dimension_numbers = #tpu.dot_dimension_numbers<[1], [0], [0], [1], [0, 0, 1, 1], [], []>} : vector<16x32xf32>, vector<32x32xf32>, vector<16x32xf32> -> vector<16x32xf32>
    %c0_8 = arith.constant 0 : index
    %c0_9 = arith.constant 0 : index
    %c0_10 = arith.constant 0 : index
    %13 = vector.load %arg7[%c0_8, %c0_9, %c0_10] : memref<3x1x32xf32, #tpu.memory_space<vmem>>, vector<1x1x32xf32>
    %14 = vector.shape_cast %13 : vector<1x1x32xf32> to vector<1x32xf32>
    %15 = vector.broadcast %14 : vector<1x32xf32> to vector<16x32xf32>
    %16 = arith.addf %12, %15 : vector<16x32xf32>
    %cst_11 = arith.constant 0.000000e+00 : f32
    %17 = vector.broadcast %cst_11 : f32 to vector<16x32xf32>
    %18 = arith.maximumf %16, %17 : vector<16x32xf32>
    %cst_12 = arith.constant dense<0.000000e+00> : vector<16x32xf32>
    %19 = tpu.matmul %9, %18, %cst_12 {dimension_numbers = #tpu.dot_dimension_numbers<[1], [0], [0], [1], [0, 0, 1, 1], [], []>} : vector<16x16xf32>, vector<16x32xf32>, vector<16x32xf32> -> vector<16x32xf32>
    %20 = arith.addf %7, %19 : vector<16x32xf32>
    %c1 = arith.constant 1 : index
    %c0_13 = arith.constant 0 : index
    %c0_14 = arith.constant 0 : index
    %21 = vector.load %arg6[%c1, %c0_13, %c0_14] : memref<3x32x32xf32, #tpu.memory_space<vmem>>, vector<1x32x32xf32>
    %22 = vector.shape_cast %21 : vector<1x32x32xf32> to vector<32x32xf32>
    %cst_15 = arith.constant dense<0.000000e+00> : vector<16x32xf32>
    %23 = tpu.matmul %20, %22, %cst_15 {dimension_numbers = #tpu.dot_dimension_numbers<[1], [0], [0], [1], [0, 0, 1, 1], [], []>} : vector<16x32xf32>, vector<32x32xf32>, vector<16x32xf32> -> vector<16x32xf32>
    %c1_16 = arith.constant 1 : index
    %c0_17 = arith.constant 0 : index
    %c0_18 = arith.constant 0 : index
    %24 = vector.load %arg7[%c1_16, %c0_17, %c0_18] : memref<3x1x32xf32, #tpu.memory_space<vmem>>, vector<1x1x32xf32>
    %25 = vector.shape_cast %24 : vector<1x1x32xf32> to vector<1x32xf32>
    %26 = vector.broadcast %25 : vector<1x32xf32> to vector<16x32xf32>
    %27 = arith.addf %23, %26 : vector<16x32xf32>
    %cst_19 = arith.constant 0.000000e+00 : f32
    %28 = vector.broadcast %cst_19 : f32 to vector<16x32xf32>
    %29 = arith.maximumf %27, %28 : vector<16x32xf32>
    %cst_20 = arith.constant dense<0.000000e+00> : vector<16x32xf32>
    %30 = tpu.matmul %9, %29, %cst_20 {dimension_numbers = #tpu.dot_dimension_numbers<[1], [0], [0], [1], [0, 0, 1, 1], [], []>} : vector<16x16xf32>, vector<16x32xf32>, vector<16x32xf32> -> vector<16x32xf32>
    %31 = arith.addf %20, %30 : vector<16x32xf32>
    %c2 = arith.constant 2 : index
    %c0_21 = arith.constant 0 : index
    %c0_22 = arith.constant 0 : index
    %32 = vector.load %arg6[%c2, %c0_21, %c0_22] : memref<3x32x32xf32, #tpu.memory_space<vmem>>, vector<1x32x32xf32>
    %33 = vector.shape_cast %32 : vector<1x32x32xf32> to vector<32x32xf32>
    %cst_23 = arith.constant dense<0.000000e+00> : vector<16x32xf32>
    %34 = tpu.matmul %31, %33, %cst_23 {dimension_numbers = #tpu.dot_dimension_numbers<[1], [0], [0], [1], [0, 0, 1, 1], [], []>} : vector<16x32xf32>, vector<32x32xf32>, vector<16x32xf32> -> vector<16x32xf32>
    %c2_24 = arith.constant 2 : index
    %c0_25 = arith.constant 0 : index
    %c0_26 = arith.constant 0 : index
    %35 = vector.load %arg7[%c2_24, %c0_25, %c0_26] : memref<3x1x32xf32, #tpu.memory_space<vmem>>, vector<1x1x32xf32>
    %36 = vector.shape_cast %35 : vector<1x1x32xf32> to vector<1x32xf32>
    %37 = vector.broadcast %36 : vector<1x32xf32> to vector<16x32xf32>
    %38 = arith.addf %34, %37 : vector<16x32xf32>
    %cst_27 = arith.constant 0.000000e+00 : f32
    %39 = vector.broadcast %cst_27 : f32 to vector<16x32xf32>
    %40 = arith.maximumf %38, %39 : vector<16x32xf32>
    %cst_28 = arith.constant dense<0.000000e+00> : vector<16x32xf32>
    %41 = tpu.matmul %9, %40, %cst_28 {dimension_numbers = #tpu.dot_dimension_numbers<[1], [0], [0], [1], [0, 0, 1, 1], [], []>} : vector<16x16xf32>, vector<16x32xf32>, vector<16x32xf32> -> vector<16x32xf32>
    %42 = arith.addf %31, %41 : vector<16x32xf32>
    %cst_29 = arith.constant dense<0.000000e+00> : vector<32xf32>
    %43 = vector.multi_reduction <add>, %42, %cst_29 [0] : vector<16x32xf32> to vector<32xf32>
    %44 = vector.shape_cast %43 : vector<32xf32> to vector<1x32xf32>
    %45 = vector.broadcast %2 : f32 to vector<1x32xf32>
    %46 = arith.divf %44, %45 : vector<1x32xf32>
    %47 = tpu.iota {dimensions = array<i32: 0>} : vector<16x32xi32>
    %48 = vector.broadcast %4 : i32 to vector<16x32xi32>
    %49 = arith.cmpi slt, %47, %48 : vector<16x32xi32>
    %cst_30 = arith.constant 0.000000e+00 : f32
    %50 = vector.broadcast %cst_30 : f32 to vector<24x32xf32>
    %c0_31 = arith.constant 0 : index
    %c0_32 = arith.constant 0 : index
    %51 = vector.load %arg17[%c0_31, %c0_32] : memref<24x32xf32, #tpu.memory_space<vmem>>, vector<24x32xf32>
    tpu.vector_store %arg17[%c0_31, %c0_32], %50 {strides = array<i32>} : memref<24x32xf32, #tpu.memory_space<vmem>>, vector<24x32xf32>,
    %c0_33 = arith.constant 0 : index
    %c0_34 = arith.constant 0 : index
    %c0_35 = arith.constant 0 : index
    %52 = vector.load %arg5[%c0_33, %c0_34, %c0_35] : memref<1x16x32xf32, #tpu.memory_space<vmem>>, vector<1x16x32xf32>
    %53 = vector.shape_cast %52 : vector<1x16x32xf32> to vector<16x32xf32>
    %c2_36 = arith.constant 2 : index
    %c0_37 = arith.constant 0 : index
    %54 = vector.load %arg17[%c2_36, %c0_37] : memref<24x32xf32, #tpu.memory_space<vmem>>, vector<16x32xf32>
    tpu.vector_store %arg17[%c2_36, %c0_37], %53 {strides = array<i32>} : memref<24x32xf32, #tpu.memory_space<vmem>>, vector<16x32xf32>,
    %c0_38 = arith.constant 0 : index
    %c0_39 = arith.constant 0 : index
    %55 = vector.load %arg17[%c0_38, %c0_39] : memref<24x32xf32, #tpu.memory_space<vmem>>, vector<16x32xf32>
    %c1_40 = arith.constant 1 : index
    %c0_41 = arith.constant 0 : index
    %56 = vector.load %arg17[%c1_40, %c0_41] : memref<24x32xf32, #tpu.memory_space<vmem>>, vector<16x32xf32>
    %c2_42 = arith.constant 2 : index
    %c0_43 = arith.constant 0 : index
    %57 = vector.load %arg17[%c2_42, %c0_43] : memref<24x32xf32, #tpu.memory_space<vmem>>, vector<16x32xf32>
    %c3 = arith.constant 3 : index
    %c0_44 = arith.constant 0 : index
    %58 = vector.load %arg17[%c3, %c0_44] : memref<24x32xf32, #tpu.memory_space<vmem>>, vector<16x32xf32>
    %c4 = arith.constant 4 : index
    %c0_45 = arith.constant 0 : index
    %59 = vector.load %arg17[%c4, %c0_45] : memref<24x32xf32, #tpu.memory_space<vmem>>, vector<16x32xf32>
    %60 = tpu.concatenate %55, %56, %57, %58, %59 in 1 : vector<16x32xf32>, vector<16x32xf32>, vector<16x32xf32>, vector<16x32xf32>, vector<16x32xf32> -> vector<16x160xf32>
    %c0_46 = arith.constant 0 : index
    %c0_47 = arith.constant 0 : index
    %c0_48 = arith.constant 0 : index
    %61 = vector.load %arg8[%c0_46, %c0_47, %c0_48] : memref<3x160x32xf32, #tpu.memory_space<vmem>>, vector<1x160x32xf32>
    %62 = vector.shape_cast %61 : vector<1x160x32xf32> to vector<160x32xf32>
    %cst_49 = arith.constant dense<0.000000e+00> : vector<16x32xf32>
    %63 = tpu.matmul %60, %62, %cst_49 {dimension_numbers = #tpu.dot_dimension_numbers<[1], [0], [0], [1], [0, 0, 1, 1], [], []>} : vector<16x160xf32>, vector<160x32xf32>, vector<16x32xf32> -> vector<16x32xf32>
    %c0_50 = arith.constant 0 : index
    %64 = memref.load %arg9[%c0_50] : memref<3xf32, #tpu.memory_space<smem>>
    %65 = vector.broadcast %64 : f32 to vector<16x32xf32>
    %66 = arith.addf %63, %65 : vector<16x32xf32>
    %cst_51 = arith.constant 0.000000e+00 : f32
    %67 = vector.broadcast %cst_51 : f32 to vector<16x32xf32>
    %68 = arith.maximumf %66, %67 : vector<16x32xf32>
    %cst_52 = arith.constant 0.000000e+00 : f32
    %69 = vector.broadcast %cst_52 : f32 to vector<16x32xf32>
    %70 = arith.select %49, %68, %69 : vector<16x32xi1>, vector<16x32xf32>
    %c2_53 = arith.constant 2 : index
    %c0_54 = arith.constant 0 : index
    %71 = vector.load %arg17[%c2_53, %c0_54] : memref<24x32xf32, #tpu.memory_space<vmem>>, vector<16x32xf32>
    tpu.vector_store %arg17[%c2_53, %c0_54], %70 {strides = array<i32>} : memref<24x32xf32, #tpu.memory_space<vmem>>, vector<16x32xf32>,
    %c0_55 = arith.constant 0 : index
    %c0_56 = arith.constant 0 : index
    %72 = vector.load %arg17[%c0_55, %c0_56] : memref<24x32xf32, #tpu.memory_space<vmem>>, vector<16x32xf32>
    %c1_57 = arith.constant 1 : index
    %c0_58 = arith.constant 0 : index
    %73 = vector.load %arg17[%c1_57, %c0_58] : memref<24x32xf32, #tpu.memory_space<vmem>>, vector<16x32xf32>
    %c2_59 = arith.constant 2 : index
    %c0_60 = arith.constant 0 : index
    %74 = vector.load %arg17[%c2_59, %c0_60] : memref<24x32xf32, #tpu.memory_space<vmem>>, vector<16x32xf32>
    %c3_61 = arith.constant 3 : index
    %c0_62 = arith.constant 0 : index
    %75 = vector.load %arg17[%c3_61, %c0_62] : memref<24x32xf32, #tpu.memory_space<vmem>>, vector<16x32xf32>
    %c4_63 = arith.constant 4 : index
    %c0_64 = arith.constant 0 : index
    %76 = vector.load %arg17[%c4_63, %c0_64] : memref<24x32xf32, #tpu.memory_space<vmem>>, vector<16x32xf32>
    %77 = tpu.concatenate %72, %73, %74, %75, %76 in 1 : vector<16x32xf32>, vector<16x32xf32>, vector<16x32xf32>, vector<16x32xf32>, vector<16x32xf32> -> vector<16x160xf32>
    %c1_65 = arith.constant 1 : index
    %c0_66 = arith.constant 0 : index
    %c0_67 = arith.constant 0 : index
    %78 = vector.load %arg8[%c1_65, %c0_66, %c0_67] : memref<3x160x32xf32, #tpu.memory_space<vmem>>, vector<1x160x32xf32>
    %79 = vector.shape_cast %78 : vector<1x160x32xf32> to vector<160x32xf32>
    %cst_68 = arith.constant dense<0.000000e+00> : vector<16x32xf32>
    %80 = tpu.matmul %77, %79, %cst_68 {dimension_numbers = #tpu.dot_dimension_numbers<[1], [0], [0], [1], [0, 0, 1, 1], [], []>} : vector<16x160xf32>, vector<160x32xf32>, vector<16x32xf32> -> vector<16x32xf32>
    %c1_69 = arith.constant 1 : index
    %81 = memref.load %arg9[%c1_69] : memref<3xf32, #tpu.memory_space<smem>>
    %82 = vector.broadcast %81 : f32 to vector<16x32xf32>
    %83 = arith.addf %80, %82 : vector<16x32xf32>
    %cst_70 = arith.constant 0.000000e+00 : f32
    %84 = vector.broadcast %cst_70 : f32 to vector<16x32xf32>
    %85 = arith.maximumf %83, %84 : vector<16x32xf32>
    %cst_71 = arith.constant 0.000000e+00 : f32
    %86 = vector.broadcast %cst_71 : f32 to vector<16x32xf32>
    %87 = arith.select %49, %85, %86 : vector<16x32xi1>, vector<16x32xf32>
    %c2_72 = arith.constant 2 : index
    %c0_73 = arith.constant 0 : index
    %88 = vector.load %arg17[%c2_72, %c0_73] : memref<24x32xf32, #tpu.memory_space<vmem>>, vector<16x32xf32>
    tpu.vector_store %arg17[%c2_72, %c0_73], %87 {strides = array<i32>} : memref<24x32xf32, #tpu.memory_space<vmem>>, vector<16x32xf32>,
    %c0_74 = arith.constant 0 : index
    %c0_75 = arith.constant 0 : index
    %89 = vector.load %arg17[%c0_74, %c0_75] : memref<24x32xf32, #tpu.memory_space<vmem>>, vector<16x32xf32>
    %c1_76 = arith.constant 1 : index
    %c0_77 = arith.constant 0 : index
    %90 = vector.load %arg17[%c1_76, %c0_77] : memref<24x32xf32, #tpu.memory_space<vmem>>, vector<16x32xf32>
    %c2_78 = arith.constant 2 : index
    %c0_79 = arith.constant 0 : index
    %91 = vector.load %arg17[%c2_78, %c0_79] : memref<24x32xf32, #tpu.memory_space<vmem>>, vector<16x32xf32>
    %c3_80 = arith.constant 3 : index
    %c0_81 = arith.constant 0 : index
    %92 = vector.load %arg17[%c3_80, %c0_81] : memref<24x32xf32, #tpu.memory_space<vmem>>, vector<16x32xf32>
    %c4_82 = arith.constant 4 : index
    %c0_83 = arith.constant 0 : index
    %93 = vector.load %arg17[%c4_82, %c0_83] : memref<24x32xf32, #tpu.memory_space<vmem>>, vector<16x32xf32>
    %94 = tpu.concatenate %89, %90, %91, %92, %93 in 1 : vector<16x32xf32>, vector<16x32xf32>, vector<16x32xf32>, vector<16x32xf32>, vector<16x32xf32> -> vector<16x160xf32>
    %c2_84 = arith.constant 2 : index
    %c0_85 = arith.constant 0 : index
    %c0_86 = arith.constant 0 : index
    %95 = vector.load %arg8[%c2_84, %c0_85, %c0_86] : memref<3x160x32xf32, #tpu.memory_space<vmem>>, vector<1x160x32xf32>
    %96 = vector.shape_cast %95 : vector<1x160x32xf32> to vector<160x32xf32>
    %cst_87 = arith.constant dense<0.000000e+00> : vector<16x32xf32>
    %97 = tpu.matmul %94, %96, %cst_87 {dimension_numbers = #tpu.dot_dimension_numbers<[1], [0], [0], [1], [0, 0, 1, 1], [], []>} : vector<16x160xf32>, vector<160x32xf32>, vector<16x32xf32> -> vector<16x32xf32>
    %c2_88 = arith.constant 2 : index
    %98 = memref.load %arg9[%c2_88] : memref<3xf32, #tpu.memory_space<smem>>
    %99 = vector.broadcast %98 : f32 to vector<16x32xf32>
    %100 = arith.addf %97, %99 : vector<16x32xf32>
    %cst_89 = arith.constant 0.000000e+00 : f32
    %101 = vector.broadcast %cst_89 : f32 to vector<16x32xf32>
    %102 = arith.maximumf %100, %101 : vector<16x32xf32>
    %cst_90 = arith.constant 0.000000e+00 : f32
    %103 = vector.broadcast %cst_90 : f32 to vector<16x32xf32>
    %104 = arith.select %49, %102, %103 : vector<16x32xi1>, vector<16x32xf32>
    %c0_91 = arith.constant 0 : index
    %c0_92 = arith.constant 0 : index
    %105 = vector.load %arg10[%c0_91, %c0_92] : memref<32x32xf32, #tpu.memory_space<vmem>>, vector<32x32xf32>
    %c0_93 = arith.constant 0 : index
    %c0_94 = arith.constant 0 : index
    %106 = vector.load %arg11[%c0_93, %c0_94] : memref<1x32xf32, #tpu.memory_space<vmem>>, vector<1x32xf32>
    %cst_95 = arith.constant dense<0.000000e+00> : vector<1x32xf32>
    %107 = tpu.matmul %46, %105, %cst_95 {dimension_numbers = #tpu.dot_dimension_numbers<[1], [0], [0], [1], [0, 0, 1, 1], [], []>} : vector<1x32xf32>, vector<32x32xf32>, vector<1x32xf32> -> vector<1x32xf32>
    %108 = arith.addf %107, %106 : vector<1x32xf32>
    %cst_96 = arith.constant 0.000000e+00 : f32
    %109 = vector.broadcast %cst_96 : f32 to vector<1x32xf32>
    %110 = arith.maximumf %108, %109 : vector<1x32xf32>
    %cst_97 = arith.constant dense<0.000000e+00> : vector<16x32xf32>
    %111 = tpu.matmul %104, %105, %cst_97 {dimension_numbers = #tpu.dot_dimension_numbers<[1], [0], [0], [1], [0, 0, 1, 1], [], []>} : vector<16x32xf32>, vector<32x32xf32>, vector<16x32xf32> -> vector<16x32xf32>
    %112 = vector.broadcast %106 : vector<1x32xf32> to vector<16x32xf32>
    %113 = arith.addf %111, %112 : vector<16x32xf32>
    %cst_98 = arith.constant 0.000000e+00 : f32
    %114 = vector.broadcast %cst_98 : f32 to vector<16x32xf32>
    %115 = arith.maximumf %113, %114 : vector<16x32xf32>
    %116 = vector.broadcast %110 : vector<1x32xf32> to vector<16x32xf32>
    %117 = arith.mulf %115, %116 : vector<16x32xf32>
    %cst_99 = arith.constant dense<0.000000e+00> : vector<16xf32>
    %118 = vector.multi_reduction <add>, %117, %cst_99 [1] : vector<16x32xf32> to vector<16xf32>
    %119 = vector.shape_cast %118 : vector<16xf32> to vector<16x1xf32>
    %120 = math.tanh %119 : vector<16x1xf32>
    %121 = vector.broadcast %120 : vector<16x1xf32> to vector<16x32xf32>
    %122 = arith.mulf %121, %115 : vector<16x32xf32>
    %cst_100 = arith.constant 0.000000e+00 : f32
    %123 = vector.broadcast %cst_100 : f32 to vector<16x32xf32>
    %124 = arith.select %49, %122, %123 : vector<16x32xi1>, vector<16x32xf32>
    %cst_101 = arith.constant dense<0.000000e+00> : vector<32xf32>
    %125 = vector.multi_reduction <add>, %124, %cst_101 [0] : vector<16x32xf32> to vector<32xf32>
    %126 = vector.shape_cast %125 : vector<32xf32> to vector<1x32xf32>
    %127 = vector.broadcast %5 : f32 to vector<1x32xf32>
    %128 = arith.divf %126, %127 : vector<1x32xf32>
    %c0_102 = arith.constant 0 : index
    %c0_103 = arith.constant 0 : index
    %c0_104 = arith.constant 0 : index
    %129 = vector.load %arg12[%c0_102, %c0_103, %c0_104] : memref<3x64x64xf32, #tpu.memory_space<vmem>>, vector<1x32x64xf32>
    %130 = vector.shape_cast %129 : vector<1x32x64xf32> to vector<32x64xf32>
    %cst_105 = arith.constant dense<0.000000e+00> : vector<1x64xf32>
    %131 = tpu.matmul %46, %130, %cst_105 {dimension_numbers = #tpu.dot_dimension_numbers<[1], [0], [0], [1], [0, 0, 1, 1], [], []>} : vector<1x32xf32>, vector<32x64xf32>, vector<1x64xf32> -> vector<1x64xf32>
    %c0_106 = arith.constant 0 : index
    %c32 = arith.constant 32 : index
    %c0_107 = arith.constant 0 : index
    %132 = vector.load %arg12[%c0_106, %c32, %c0_107] : memref<3x64x64xf32, #tpu.memory_space<vmem>>, vector<1x32x64xf32>
    %133 = vector.shape_cast %132 : vector<1x32x64xf32> to vector<32x64xf32>
    %cst_108 = arith.constant dense<0.000000e+00> : vector<1x64xf32>
    %134 = tpu.matmul %128, %133, %cst_108 {dimension_numbers = #tpu.dot_dimension_numbers<[1], [0], [0], [1], [0, 0, 1, 1], [], []>} : vector<1x32xf32>, vector<32x64xf32>, vector<1x64xf32> -> vector<1x64xf32>
    %135 = arith.addf %131, %134 : vector<1x64xf32>
    %c0_109 = arith.constant 0 : index
    %c0_110 = arith.constant 0 : index
    %c0_111 = arith.constant 0 : index
    %136 = vector.load %arg13[%c0_109, %c0_110, %c0_111] : memref<3x1x64xf32, #tpu.memory_space<vmem>>, vector<1x1x64xf32>
    %137 = vector.shape_cast %136 : vector<1x1x64xf32> to vector<1x64xf32>
    %138 = arith.addf %135, %137 : vector<1x64xf32>
    %cst_112 = arith.constant 0.000000e+00 : f32
    %139 = vector.broadcast %cst_112 : f32 to vector<1x64xf32>
    %140 = arith.maximumf %138, %139 : vector<1x64xf32>
    %c1_113 = arith.constant 1 : index
    %c0_114 = arith.constant 0 : index
    %c0_115 = arith.constant 0 : index
    %141 = vector.load %arg12[%c1_113, %c0_114, %c0_115] : memref<3x64x64xf32, #tpu.memory_space<vmem>>, vector<1x64x64xf32>
    %142 = vector.shape_cast %141 : vector<1x64x64xf32> to vector<64x64xf32>
    %cst_116 = arith.constant dense<0.000000e+00> : vector<1x64xf32>
    %143 = tpu.matmul %140, %142, %cst_116 {dimension_numbers = #tpu.dot_dimension_numbers<[1], [0], [0], [1], [0, 0, 1, 1], [], []>} : vector<1x64xf32>, vector<64x64xf32>, vector<1x64xf32> -> vector<1x64xf32>
    %c1_117 = arith.constant 1 : index
    %c0_118 = arith.constant 0 : index
    %c0_119 = arith.constant 0 : index
    %144 = vector.load %arg13[%c1_117, %c0_118, %c0_119] : memref<3x1x64xf32, #tpu.memory_space<vmem>>, vector<1x1x64xf32>
    %145 = vector.shape_cast %144 : vector<1x1x64xf32> to vector<1x64xf32>
    %146 = arith.addf %143, %145 : vector<1x64xf32>
    %cst_120 = arith.constant 0.000000e+00 : f32
    %147 = vector.broadcast %cst_120 : f32 to vector<1x64xf32>
    %148 = arith.maximumf %146, %147 : vector<1x64xf32>
    %c2_121 = arith.constant 2 : index
    %c0_122 = arith.constant 0 : index
    %c0_123 = arith.constant 0 : index
    %149 = vector.load %arg12[%c2_121, %c0_122, %c0_123] : memref<3x64x64xf32, #tpu.memory_space<vmem>>, vector<1x64x64xf32>
    %150 = vector.shape_cast %149 : vector<1x64x64xf32> to vector<64x64xf32>
    %cst_124 = arith.constant dense<0.000000e+00> : vector<1x64xf32>
    %151 = tpu.matmul %148, %150, %cst_124 {dimension_numbers = #tpu.dot_dimension_numbers<[1], [0], [0], [1], [0, 0, 1, 1], [], []>} : vector<1x64xf32>, vector<64x64xf32>, vector<1x64xf32> -> vector<1x64xf32>
    %c2_125 = arith.constant 2 : index
    %c0_126 = arith.constant 0 : index
    %c0_127 = arith.constant 0 : index
    %152 = vector.load %arg13[%c2_125, %c0_126, %c0_127] : memref<3x1x64xf32, #tpu.memory_space<vmem>>, vector<1x1x64xf32>
    %153 = vector.shape_cast %152 : vector<1x1x64xf32> to vector<1x64xf32>
    %154 = arith.addf %151, %153 : vector<1x64xf32>
    %cst_128 = arith.constant 0.000000e+00 : f32
    %155 = vector.broadcast %cst_128 : f32 to vector<1x64xf32>
    %156 = arith.maximumf %154, %155 : vector<1x64xf32>
    %c0_129 = arith.constant 0 : index
    %c0_130 = arith.constant 0 : index
    %157 = vector.load %arg14[%c0_129, %c0_130] : memref<1x64xf32, #tpu.memory_space<vmem>>, vector<1x64xf32>
    %158 = arith.mulf %156, %157 : vector<1x64xf32>
    %cst_131 = arith.constant dense<0.000000e+00> : vector<1xf32>
    %159 = vector.multi_reduction <add>, %158, %cst_131 [1] : vector<1x64xf32> to vector<1xf32>
    %160 = vector.shape_cast %159 : vector<1xf32> to vector<1x1xf32>
    %c0_132 = arith.constant 0 : index
    %161 = memref.load %arg15[%c0_132] : memref<1xf32, #tpu.memory_space<smem>>
    %162 = vector.broadcast %161 : f32 to vector<1x1xf32>
    %163 = arith.addf %160, %162 : vector<1x1xf32>
    %164 = vector.shape_cast %163 : vector<1x1xf32> to vector<1x1x1xf32>
    %165 = vector.shape_cast %164 : vector<1x1x1xf32> to vector<1x1x1xf32>
    %166 = vector.broadcast %165 : vector<1x1x1xf32> to vector<1x1x128xf32>
    %c0_133 = arith.constant 0 : index
    %c0_134 = arith.constant 0 : index
    %c0_135 = arith.constant 0 : index
    %167 = vector.load %arg16[%c0_133, %c0_134, %c0_135] : memref<1x1x128xf32, #tpu.memory_space<vmem>>, vector<1x1x128xf32>
    tpu.vector_store %arg16[%c0_133, %c0_134, %c0_135], %166 {strides = array<i32>} : memref<1x1x128xf32, #tpu.memory_space<vmem>>, vector<1x1x128xf32>,
    return
  }
  func.func @transform_0(%arg0: i32, %arg1: memref<4xi32, #tpu.memory_space<smem>>, %arg2: memref<4xi32, #tpu.memory_space<smem>>) -> (i32, i32, i32) {
    %c0_i32 = arith.constant 0 : i32
    %c0_i32_0 = arith.constant 0 : i32
    %c0_i32_1 = arith.constant 0 : i32
    return %arg0, %c0_i32, %c0_i32_0 : i32, i32, i32
  }
  func.func @transform_1(%arg0: i32, %arg1: memref<4xi32, #tpu.memory_space<smem>>, %arg2: memref<4xi32, #tpu.memory_space<smem>>) -> (i32, i32, i32) {
    %c0_i32 = arith.constant 0 : i32
    %c0_i32_0 = arith.constant 0 : i32
    %c0_i32_1 = arith.constant 0 : i32
    return %arg0, %c0_i32, %c0_i32_0 : i32, i32, i32
  }
  func.func @transform_2(%arg0: i32, %arg1: memref<4xi32, #tpu.memory_space<smem>>, %arg2: memref<4xi32, #tpu.memory_space<smem>>) -> (i32, i32, i32) {
    %c0_i32 = arith.constant 0 : i32
    %c0_i32_0 = arith.constant 0 : i32
    %c0_i32_1 = arith.constant 0 : i32
    return %arg0, %c0_i32, %c0_i32_0 : i32, i32, i32
  }
  func.func @transform_3(%arg0: i32, %arg1: memref<4xi32, #tpu.memory_space<smem>>, %arg2: memref<4xi32, #tpu.memory_space<smem>>) -> (i32, i32, i32) {
    %c0_i32 = arith.constant 0 : i32
    %c0_i32_0 = arith.constant 0 : i32
    %c0_i32_1 = arith.constant 0 : i32
    %c0_i32_2 = arith.constant 0 : i32
    return %c0_i32, %c0_i32_0, %c0_i32_1 : i32, i32, i32
  }
  func.func @transform_4(%arg0: i32, %arg1: memref<4xi32, #tpu.memory_space<smem>>, %arg2: memref<4xi32, #tpu.memory_space<smem>>) -> (i32, i32, i32) {
    %c0_i32 = arith.constant 0 : i32
    %c0_i32_0 = arith.constant 0 : i32
    %c0_i32_1 = arith.constant 0 : i32
    %c0_i32_2 = arith.constant 0 : i32
    return %c0_i32, %c0_i32_0, %c0_i32_1 : i32, i32, i32
  }
  func.func @transform_5(%arg0: i32, %arg1: memref<4xi32, #tpu.memory_space<smem>>, %arg2: memref<4xi32, #tpu.memory_space<smem>>) -> (i32, i32, i32) {
    %c0_i32 = arith.constant 0 : i32
    %c0_i32_0 = arith.constant 0 : i32
    %c0_i32_1 = arith.constant 0 : i32
    %c0_i32_2 = arith.constant 0 : i32
    return %c0_i32, %c0_i32_0, %c0_i32_1 : i32, i32, i32
  }
  func.func @transform_6(%arg0: i32, %arg1: memref<4xi32, #tpu.memory_space<smem>>, %arg2: memref<4xi32, #tpu.memory_space<smem>>) -> i32 {
    %c0_i32 = arith.constant 0 : i32
    %c0_i32_0 = arith.constant 0 : i32
    return %c0_i32 : i32
  }
  func.func @transform_7(%arg0: i32, %arg1: memref<4xi32, #tpu.memory_space<smem>>, %arg2: memref<4xi32, #tpu.memory_space<smem>>) -> (i32, i32) {
    %c0_i32 = arith.constant 0 : i32
    %c0_i32_0 = arith.constant 0 : i32
    %c0_i32_1 = arith.constant 0 : i32
    return %c0_i32, %c0_i32_0 : i32, i32
  }
  func.func @transform_8(%arg0: i32, %arg1: memref<4xi32, #tpu.memory_space<smem>>, %arg2: memref<4xi32, #tpu.memory_space<smem>>) -> (i32, i32) {
    %c0_i32 = arith.constant 0 : i32
    %c0_i32_0 = arith.constant 0 : i32
    %c0_i32_1 = arith.constant 0 : i32
    return %c0_i32, %c0_i32_0 : i32, i32
  }
  func.func @transform_9(%arg0: i32, %arg1: memref<4xi32, #tpu.memory_space<smem>>, %arg2: memref<4xi32, #tpu.memory_space<smem>>) -> (i32, i32, i32) {
    %c0_i32 = arith.constant 0 : i32
    %c0_i32_0 = arith.constant 0 : i32
    %c0_i32_1 = arith.constant 0 : i32
    %c0_i32_2 = arith.constant 0 : i32
    return %c0_i32, %c0_i32_0, %c0_i32_1 : i32, i32, i32
  }
  func.func @transform_10(%arg0: i32, %arg1: memref<4xi32, #tpu.memory_space<smem>>, %arg2: memref<4xi32, #tpu.memory_space<smem>>) -> (i32, i32, i32) {
    %c0_i32 = arith.constant 0 : i32
    %c0_i32_0 = arith.constant 0 : i32
    %c0_i32_1 = arith.constant 0 : i32
    %c0_i32_2 = arith.constant 0 : i32
    return %c0_i32, %c0_i32_0, %c0_i32_1 : i32, i32, i32
  }
  func.func @transform_11(%arg0: i32, %arg1: memref<4xi32, #tpu.memory_space<smem>>, %arg2: memref<4xi32, #tpu.memory_space<smem>>) -> (i32, i32) {
    %c0_i32 = arith.constant 0 : i32
    %c0_i32_0 = arith.constant 0 : i32
    %c0_i32_1 = arith.constant 0 : i32
    return %c0_i32, %c0_i32_0 : i32, i32
  }
  func.func @transform_12(%arg0: i32, %arg1: memref<4xi32, #tpu.memory_space<smem>>, %arg2: memref<4xi32, #tpu.memory_space<smem>>) -> i32 {
    %c0_i32 = arith.constant 0 : i32
    %c0_i32_0 = arith.constant 0 : i32
    return %c0_i32 : i32
  }
  func.func @transform_13(%arg0: i32, %arg1: memref<4xi32, #tpu.memory_space<smem>>, %arg2: memref<4xi32, #tpu.memory_space<smem>>) -> (i32, i32, i32) {
    %c0_i32 = arith.constant 0 : i32
    %c0_i32_0 = arith.constant 0 : i32
    %c0_i32_1 = arith.constant 0 : i32
    return %arg0, %c0_i32, %c0_i32_0 : i32, i32, i32
  }
}

</mosaic_0001>

<llo_original>
// kernel: kcat_forward.1
$region0: #{kcat_forward.1}
  #allocation0 [shape = 'u32[]', space=smem, size = 0x4, offset = 0x4, fixed_abs, tag = 'smem constant byte address 0x4 - core index']
  #allocation1 [shape = 'u32[144,128]{1,0:T(1,128)}', space=vmem, size = 0x12000, scoped, tag = 'internal scratch']
  #allocation2 [shape = 'f32[24,32]{1,0:T(8,128)}', space=vmem, size = 0x3000, scoped, tag = 'scratch operand']
  #allocation3 [shape = 's32[1]{0}', space=sflag, size = 0x4, scoped, tag = 'scoped memory for kcat_forward.1']
  #allocation4 [shape = 'u8[512]{0}', space=smem, size = 0x200, scoped, tag = 'prefetched SMEM operand 0']
  #allocation5 [shape = 'u8[512]{0}', space=smem, size = 0x200, scoped, tag = 'prefetched SMEM operand 1']
  #allocation6 [shape = 'f32[1]{0:T(128)S(6)}', space=smem, size = 0x200, scoped, tag = 'scoped memory for kcat_forward.1']
  %s0 = inlined_call_operand.vmem [shape: s32[4], index: 0, kind: input, shape index: {}]
  %s1 = inlined_call_operand.vmem [shape: s32[4], index: 1, kind: input, shape index: {}]
  %s2 = inlined_call_operand.vmem [shape: f32[4,16,32], index: 2, kind: input, shape index: {}]
  %s3 = inlined_call_operand.vmem [shape: f32[4,16,16], index: 3, kind: input, shape index: {}]
  %s4 = inlined_call_operand.vmem [shape: f32[4,16,32], index: 4, kind: input, shape index: {}]
  %s5 = inlined_call_operand.vmem [shape: f32[3,32,32], index: 5, kind: input, shape index: {}]
  %s6 = inlined_call_operand.vmem [shape: f32[3,1,32], index: 6, kind: input, shape index: {}]
  %s7 = inlined_call_operand.vmem [shape: f32[3,160,32], index: 7, kind: input, shape index: {}]
  %s8 = inlined_call_operand.vmem [shape: f32[3], index: 8, kind: input, shape index: {}]
  %s9 = inlined_call_operand.vmem [shape: f32[32,32], index: 9, kind: input, shape index: {}]
  %s10 = inlined_call_operand.vmem [shape: f32[1,32], index: 10, kind: input, shape index: {}]
  %s11 = inlined_call_operand.vmem [shape: f32[3,64,64], index: 11, kind: input, shape index: {}]
  %s12 = inlined_call_operand.vmem [shape: f32[3,1,64], index: 12, kind: input, shape index: {}]
  %s13 = inlined_call_operand.vmem [shape: f32[1,64], index: 13, kind: input, shape index: {}]
  %s14 = inlined_call_operand.<no memory space> [shape: f32[1], index: 14, kind: input, shape index: {}]
  %s15 = inlined_call_operand.vmem [shape: f32[4,1,128], index: 15, kind: output, shape index: {}]
  %s16 = sld [smem:[#allocation0]]
  $region89: #{kcat_forward.1} parent=0
    _
  %s18 = ssub.s32 1, %s16
  %s19 = scalar_select 0, %s18, %s16
  %s20 = sshll.u32 %s0, 4
  %s21 = int_to_ptr.vmem [resolvable:$true] %s20
  %23 = dma.vmem_to_smem %s21, 16, [#allocation4], [#allocation3]
  %s24 = sshll.u32 %s1, 4
  %s25 = int_to_ptr.vmem [resolvable:$true] %s24
  %27 = dma.vmem_to_smem %s25, 16, [#allocation5], [#allocation3]
  %28 = sst [smem:[#allocation6]] %s14
  %29 = dma.done [#allocation3], 32
  %30 = sfence
  $region1: #{kcat_forward.1} parent=0
    #allocation7 [shape = 'u8[512]{0}', space=smem, size = 0x200, scoped, tag = 'input window, operand 8, single buffered']
    #allocation8 [shape = 's32[2]{0}', space=sflag, size = 0x8, scoped, tag = 'scoped memory for kcat_forward.1']
    %31 = vsyncpa [#allocation8], 0
    loop: start=0, step=1, limit=6
    $region2: #{kcat_forward.1} parent=1 // loop_pre_header
      _
    $region3: #{kcat_forward.1} parent=1 // loop_header
      %s33 = sphi 0, %s37
      %p34 = scmp.ge.s32.totalorder %s33, 6
      %s43 = sphi 0, %s45
      %s46 = sphi 0, %s43
      %s47 = sphi 0, %s46
      %s63 = sphi 0, %s47
      %s69 = sphi 0, %s71
      %s72 = sphi 0, %s69
      %s73 = sphi 0, %s72
      %s89 = sphi 0, %s73
      %s95 = sphi 0, %s97
      %s98 = sphi 0, %s95
      %s99 = sphi 0, %s98
      %s115 = sphi 0, %s99
      %s119 = sphi 0, %s119
      %s121 = sphi 0, %s119
      %s122 = sphi 0, %s121
      %s136 = sphi 0, %s122
      %s140 = sphi 0, %s140
      %s142 = sphi 0, %s140
      %s143 = sphi 0, %s142
      %s157 = sphi 0, %s143
      %s161 = sphi 0, %s161
      %s163 = sphi 0, %s161
      %s164 = sphi 0, %s163
      %s178 = sphi 0, %s164
      %s182 = sphi 0, %s182
      %s184 = sphi 0, %s182
      %s185 = sphi 0, %s184
      %s199 = sphi 0, %s185
      %s203 = sphi 0, %s203
      %s205 = sphi 0, %s203
      %s206 = sphi 0, %s205
      %s220 = sphi 0, %s206
      %s224 = sphi 0, %s224
      %s226 = sphi 0, %s224
      %s227 = sphi 0, %s226
      %s241 = sphi 0, %s227
      %s245 = sphi 0, %s245
      %s247 = sphi 0, %s245
      %s248 = sphi 0, %s247
      %s262 = sphi 0, %s248
      %s266 = sphi 0, %s266
      %s268 = sphi 0, %s266
      %s269 = sphi 0, %s268
      %s283 = sphi 0, %s269
      %s287 = sphi 0, %s287
      %s289 = sphi 0, %s287
      %s290 = sphi 0, %s289
      %s304 = sphi 0, %s290
      %s308 = sphi 0, %s308
      %s310 = sphi 0, %s308
      %s311 = sphi 0, %s310
      %s325 = sphi 0, %s311
      %s331 = sphi 0, %s333
      %s334 = sphi 0, %s331
      %s335 = sphi 0, %s334
      %s351 = sphi 0, %s335
    $region4: #{kcat_forward.1} parent=1 // loop_header_branch
      %36 = sbr.rel (%p34) target = $region8
    $region5: #{kcat_forward.1} parent=1 // loop_body
      %s38 = ssub.s32 %s33, 1
      %s39 = ssub.s32 %s33, 2
      %s40 = sadd.s32 %s33, 1
      %s41 = ssub.s32 %s33, %s40
      %p42 = scmp.eq.s32.totalorder %s41, 0
      %s44 = sadd.s32 %s43, 1
      %s45 = scalar_select %p42, %s43, %s44
      %p48 = pneg %p42
      %p49 = scmp.eq.s32.totalorder %s33, 3
      %p50 = por %p48, %p49
      %p51 = scmp.ne.s32.totalorder %s43, %s46
      %p52 = scmp.eq.s32.totalorder %s33, 0
      %p53 = por %p51, %p52
      %p54 = scmp.ne.s32.totalorder %s43, %s46
      %p55 = scmp.eq.s32.totalorder %s38, 3
      %p56 = por %p54, %p55
      %p57 = scmp.ne.s32.totalorder %s46, %s47
      %p58 = scmp.eq.s32.totalorder %s38, 0
      %p59 = por %p57, %p58
      %p60 = scmp.ne.s32.totalorder %s46, %s47
      %p61 = scmp.eq.s32.totalorder %s39, 3
      %p62 = por %p60, %p61
      %p64 = scmp.ne.s32.totalorder %s47, %s63
      %p65 = scmp.eq.s32.totalorder %s39, 0
      %p66 = por %p64, %p65
      %s67 = ssub.s32 %s33, %s40
      %p68 = scmp.eq.s32.totalorder %s67, 0
      %s70 = sadd.s32 %s69, 1
      %s71 = scalar_select %p68, %s69, %s70
      %p74 = pneg %p68
      %p75 = scmp.eq.s32.totalorder %s33, 3
      %p76 = por %p74, %p75
      %p77 = scmp.ne.s32.totalorder %s69, %s72
      %p78 = scmp.eq.s32.totalorder %s33, 0
      %p79 = por %p77, %p78
      %p80 = scmp.ne.s32.totalorder %s69, %s72
      %p81 = scmp.eq.s32.totalorder %s38, 3
      %p82 = por %p80, %p81
      %p83 = scmp.ne.s32.totalorder %s72, %s73
      %p84 = scmp.eq.s32.totalorder %s38, 0
      %p85 = por %p83, %p84
      %p86 = scmp.ne.s32.totalorder %s72, %s73
      %p87 = scmp.eq.s32.totalorder %s39, 3
      %p88 = por %p86, %p87
      %p90 = scmp.ne.s32.totalorder %s73, %s89
      %p91 = scmp.eq.s32.totalorder %s39, 0
      %p92 = por %p90, %p91
      %s93 = ssub.s32 %s33, %s40
      %p94 = scmp.eq.s32.totalorder %s93, 0
      %s96 = sadd.s32 %s95, 1
      %s97 = scalar_select %p94, %s95, %s96
      %p100 = pneg %p94
      %p101 = scmp.eq.s32.totalorder %s33, 3
      %p102 = por %p100, %p101
      %p103 = scmp.ne.s32.totalorder %s95, %s98
      %p104 = scmp.eq.s32.totalorder %s33, 0
      %p105 = por %p103, %p104
      %p106 = scmp.ne.s32.totalorder %s95, %s98
      %p107 = scmp.eq.s32.totalorder %s38, 3
      %p108 = por %p106, %p107
      %p109 = scmp.ne.s32.totalorder %s98, %s99
      %p110 = scmp.eq.s32.totalorder %s38, 0
      %p111 = por %p109, %p110
      %p112 = scmp.ne.s32.totalorder %s98, %s99
      %p113 = scmp.eq.s32.totalorder %s39, 3
      %p114 = por %p112, %p113
      %p116 = scmp.ne.s32.totalorder %s99, %s115
      %p117 = scmp.eq.s32.totalorder %s39, 0
      %p118 = por %p116, %p117
      %s120 = sadd.s32 %s119, 1
      %p123 = scmp.eq.s32.totalorder %s33, 3
      %p124 = scmp.ne.s32.totalorder %s119, %s121
      %p125 = scmp.eq.s32.totalorder %s33, 0
      %p126 = por %p124, %p125
      %p127 = scmp.ne.s32.totalorder %s119, %s121
      %p128 = scmp.eq.s32.totalorder %s38, 3
      %p129 = por %p127, %p128
      %p130 = scmp.ne.s32.totalorder %s121, %s122
      %p131 = scmp.eq.s32.totalorder %s38, 0
      %p132 = por %p130, %p131
      %p133 = scmp.ne.s32.totalorder %s121, %s122
      %p134 = scmp.eq.s32.totalorder %s39, 3
      %p135 = por %p133, %p134
      %p137 = scmp.ne.s32.totalorder %s122, %s136
      %p138 = scmp.eq.s32.totalorder %s39, 0
      %p139 = por %p137, %p138
      %s141 = sadd.s32 %s140, 1
      %p144 = scmp.eq.s32.totalorder %s33, 3
      %p145 = scmp.ne.s32.totalorder %s140, %s142
      %p146 = scmp.eq.s32.totalorder %s33, 0
      %p147 = por %p145, %p146
      %p148 = scmp.ne.s32.totalorder %s140, %s142
      %p149 = scmp.eq.s32.totalorder %s38, 3
      %p150 = por %p148, %p149
      %p151 = scmp.ne.s32.totalorder %s142, %s143
      %p152 = scmp.eq.s32.totalorder %s38, 0
      %p153 = por %p151, %p152
      %p154 = scmp.ne.s32.totalorder %s142, %s143
      %p155 = scmp.eq.s32.totalorder %s39, 3
      %p156 = por %p154, %p155
      %p158 = scmp.ne.s32.totalorder %s143, %s157
      %p159 = scmp.eq.s32.totalorder %s39, 0
      %p160 = por %p158, %p159
      %s162 = sadd.s32 %s161, 1
      %p165 = scmp.eq.s32.totalorder %s33, 3
      %p166 = scmp.ne.s32.totalorder %s161, %s163
      %p167 = scmp.eq.s32.totalorder %s33, 0
      %p168 = por %p166, %p167
      %p169 = scmp.ne.s32.totalorder %s161, %s163
      %p170 = scmp.eq.s32.totalorder %s38, 3
      %p171 = por %p169, %p170
      %p172 = scmp.ne.s32.totalorder %s163, %s164
      %p173 = scmp.eq.s32.totalorder %s38, 0
      %p174 = por %p172, %p173
      %p175 = scmp.ne.s32.totalorder %s163, %s164
      %p176 = scmp.eq.s32.totalorder %s39, 3
      %p177 = por %p175, %p176
      %p179 = scmp.ne.s32.totalorder %s164, %s178
      %p180 = scmp.eq.s32.totalorder %s39, 0
      %p181 = por %p179, %p180
      %s183 = sadd.s32 %s182, 1
      %p186 = scmp.eq.s32.totalorder %s33, 3
      %p187 = scmp.ne.s32.totalorder %s182, %s184
      %p188 = scmp.eq.s32.totalorder %s33, 0
      %p189 = por %p187, %p188
      %p190 = scmp.ne.s32.totalorder %s182, %s184
      %p191 = scmp.eq.s32.totalorder %s38, 3
      %p192 = por %p190, %p191
      %p193 = scmp.ne.s32.totalorder %s184, %s185
      %p194 = scmp.eq.s32.totalorder %s38, 0
      %p195 = por %p193, %p194
      %p196 = scmp.ne.s32.totalorder %s184, %s185
      %p197 = scmp.eq.s32.totalorder %s39, 3
      %p198 = por %p196, %p197
      %p200 = scmp.ne.s32.totalorder %s185, %s199
      %p201 = scmp.eq.s32.totalorder %s39, 0
      %p202 = por %p200, %p201
      %s204 = sadd.s32 %s203, 1
      %p207 = scmp.eq.s32.totalorder %s33, 3
      %p208 = scmp.ne.s32.totalorder %s203, %s205
      %p209 = scmp.eq.s32.totalorder %s33, 0
      %p210 = por %p208, %p209
      %p211 = scmp.ne.s32.totalorder %s203, %s205
      %p212 = scmp.eq.s32.totalorder %s38, 3
      %p213 = por %p211, %p212
      %p214 = scmp.ne.s32.totalorder %s205, %s206
      %p215 = scmp.eq.s32.totalorder %s38, 0
      %p216 = por %p214, %p215
      %p217 = scmp.ne.s32.totalorder %s205, %s206
      %p218 = scmp.eq.s32.totalorder %s39, 3
      %p219 = por %p217, %p218
      %p221 = scmp.ne.s32.totalorder %s206, %s220
      %p222 = scmp.eq.s32.totalorder %s39, 0
      %p223 = por %p221, %p222
      %s225 = sadd.s32 %s224, 1
      %p228 = scmp.eq.s32.totalorder %s33, 3
      %p229 = scmp.ne.s32.totalorder %s224, %s226
      %p230 = scmp.eq.s32.totalorder %s33, 0
      %p231 = por %p229, %p230
      %p232 = scmp.ne.s32.totalorder %s224, %s226
      %p233 = scmp.eq.s32.totalorder %s38, 3
      %p234 = por %p232, %p233
      %p235 = scmp.ne.s32.totalorder %s226, %s227
      %p236 = scmp.eq.s32.totalorder %s38, 0
      %p237 = por %p235, %p236
      %p238 = scmp.ne.s32.totalorder %s226, %s227
      %p239 = scmp.eq.s32.totalorder %s39, 3
      %p240 = por %p238, %p239
      %p242 = scmp.ne.s32.totalorder %s227, %s241
      %p243 = scmp.eq.s32.totalorder %s39, 0
      %p244 = por %p242, %p243
      %s246 = sadd.s32 %s245, 1
      %p249 = scmp.eq.s32.totalorder %s33, 3
      %p250 = scmp.ne.s32.totalorder %s245, %s247
      %p251 = scmp.eq.s32.totalorder %s33, 0
      %p252 = por %p250, %p251
      %p253 = scmp.ne.s32.totalorder %s245, %s247
      %p254 = scmp.eq.s32.totalorder %s38, 3
      %p255 = por %p253, %p254
      %p256 = scmp.ne.s32.totalorder %s247, %s248
      %p257 = scmp.eq.s32.totalorder %s38, 0
      %p258 = por %p256, %p257
      %p259 = scmp.ne.s32.totalorder %s247, %s248
      %p260 = scmp.eq.s32.totalorder %s39, 3
      %p261 = por %p259, %p260
      %p263 = scmp.ne.s32.totalorder %s248, %s262
      %p264 = scmp.eq.s32.totalorder %s39, 0
      %p265 = por %p263, %p264
      %s267 = sadd.s32 %s266, 1
      %p270 = scmp.eq.s32.totalorder %s33, 3
      %p271 = scmp.ne.s32.totalorder %s266, %s268
      %p272 = scmp.eq.s32.totalorder %s33, 0
      %p273 = por %p271, %p272
      %p274 = scmp.ne.s32.totalorder %s266, %s268
      %p275 = scmp.eq.s32.totalorder %s38, 3
      %p276 = por %p274, %p275
      %p277 = scmp.ne.s32.totalorder %s268, %s269
      %p278 = scmp.eq.s32.totalorder %s38, 0
      %p279 = por %p277, %p278
      %p280 = scmp.ne.s32.totalorder %s268, %s269
      %p281 = scmp.eq.s32.totalorder %s39, 3
      %p282 = por %p280, %p281
      %p284 = scmp.ne.s32.totalorder %s269, %s283
      %p285 = scmp.eq.s32.totalorder %s39, 0
      %p286 = por %p284, %p285
      %s288 = sadd.s32 %s287, 1
      %p291 = scmp.eq.s32.totalorder %s33, 3
      %p292 = scmp.ne.s32.totalorder %s287, %s289
      %p293 = scmp.eq.s32.totalorder %s33, 0
      %p294 = por %p292, %p293
      %p295 = scmp.ne.s32.totalorder %s287, %s289
      %p296 = scmp.eq.s32.totalorder %s38, 3
      %p297 = por %p295, %p296
      %p298 = scmp.ne.s32.totalorder %s289, %s290
      %p299 = scmp.eq.s32.totalorder %s38, 0
      %p300 = por %p298, %p299
      %p301 = scmp.ne.s32.totalorder %s289, %s290
      %p302 = scmp.eq.s32.totalorder %s39, 3
      %p303 = por %p301, %p302
      %p305 = scmp.ne.s32.totalorder %s290, %s304
      %p306 = scmp.eq.s32.totalorder %s39, 0
      %p307 = por %p305, %p306
      %s309 = sadd.s32 %s308, 1
      %p312 = scmp.eq.s32.totalorder %s33, 3
      %p313 = scmp.ne.s32.totalorder %s308, %s310
      %p314 = scmp.eq.s32.totalorder %s33, 0
      %p315 = por %p313, %p314
      %p316 = scmp.ne.s32.totalorder %s308, %s310
      %p317 = scmp.eq.s32.totalorder %s38, 3
      %p318 = por %p316, %p317
      %p319 = scmp.ne.s32.totalorder %s310, %s311
      %p320 = scmp.eq.s32.totalorder %s38, 0
      %p321 = por %p319, %p320
      %p322 = scmp.ne.s32.totalorder %s310, %s311
      %p323 = scmp.eq.s32.totalorder %s39, 3
      %p324 = por %p322, %p323
      %p326 = scmp.ne.s32.totalorder %s311, %s325
      %p327 = scmp.eq.s32.totalorder %s39, 0
      %p328 = por %p326, %p327
      %s329 = ssub.s32 %s33, %s40
      %p330 = scmp.eq.s32.totalorder %s329, 0
      %s332 = sadd.s32 %s331, 1
      %s333 = scalar_select %p330, %s331, %s332
      %p336 = pneg %p330
      %p337 = scmp.eq.s32.totalorder %s33, 3
      %p338 = por %p336, %p337
      %p339 = scmp.ne.s32.totalorder %s331, %s334
      %p340 = scmp.eq.s32.totalorder %s33, 0
      %p341 = por %p339, %p340
      %p342 = scmp.ne.s32.totalorder %s331, %s334
      %p343 = scmp.eq.s32.totalorder %s38, 3
      %p344 = por %p342, %p343
      %p345 = scmp.ne.s32.totalorder %s334, %s335
      %p346 = scmp.eq.s32.totalorder %s38, 0
      %p347 = por %p345, %p346
      %p348 = scmp.ne.s32.totalorder %s334, %s335
      %p349 = scmp.eq.s32.totalorder %s39, 3
      %p350 = por %p348, %p349
      %p352 = scmp.ne.s32.totalorder %s335, %s351
      %p353 = scmp.eq.s32.totalorder %s39, 0
      %p354 = por %p352, %p353
      %p355 = scmp.le.s32.totalorder 1, %s33
      %p356 = scmp.lt.s32.totalorder %s33, 5
      %p357 = pnand %p355, %p356
      %p358 = pneg %p357
      // Predicated region
      $region9: #{kcat_forward.1} parent=5 // pred_check
        _
      $region10: #{kcat_forward.1} parent=5 // pred_check_branch
        %360 = sbr.rel (%p357) target = $region12
      $region11: #{kcat_forward.1} parent=5 // pred_region
        %s361 = ssub.s32 %s33, 1
        // Predicated region
        $region13: #{kcat_forward.1} parent=11 // pred_check
          %p362 = pneg %p132
        $region14: #{kcat_forward.1} parent=11 // pred_check_branch
          %364 = sbr.rel (%p362) target = $region16
        $region15: #{kcat_forward.1} parent=11 // pred_region
          _
        $region16: #{kcat_forward.1} parent=11 // pred_fallthru
          _
        // Predicated region
        $region17: #{kcat_forward.1} parent=11 // pred_check
          %p365 = pneg %p153
        $region18: #{kcat_forward.1} parent=11 // pred_check_branch
          %367 = sbr.rel (%p365) target = $region20
        $region19: #{kcat_forward.1} parent=11 // pred_region
          _
        $region20: #{kcat_forward.1} parent=11 // pred_fallthru
          _
        // Predicated region
        $region21: #{kcat_forward.1} parent=11 // pred_check
          %p368 = pneg %p174
        $region22: #{kcat_forward.1} parent=11 // pred_check_branch
          %370 = sbr.rel (%p368) target = $region24
        $region23: #{kcat_forward.1} parent=11 // pred_region
          _
        $region24: #{kcat_forward.1} parent=11 // pred_fallthru
          _
        // Predicated region
        $region25: #{kcat_forward.1} parent=11 // pred_check
          %p371 = pneg %p195
        $region26: #{kcat_forward.1} parent=11 // pred_check_branch
          %373 = sbr.rel (%p371) target = $region28
        $region27: #{kcat_forward.1} parent=11 // pred_region
          %s375 = ssub.s32 16, 16
          %376 = vsyncadd [#allocation8], %s375
          %s378 = sshll.u32 %s8, 4
          %s379 = int_to_ptr.vmem [resolvable:$true] %s378
          %381 = dma.vmem_to_smem %s379, 16, [#allocation7], [#allocation8]
        $region28: #{kcat_forward.1} parent=11 // pred_fallthru
          _
        // Predicated region
        $region29: #{kcat_forward.1} parent=11 // pred_check
          %p382 = pneg %p216
        $region30: #{kcat_forward.1} parent=11 // pred_check_branch
          %384 = sbr.rel (%p382) target = $region32
        $region31: #{kcat_forward.1} parent=11 // pred_region
          _
        $region32: #{kcat_forward.1} parent=11 // pred_fallthru
          _
        // Predicated region
        $region33: #{kcat_forward.1} parent=11 // pred_check
          %p385 = pneg %p237
        $region34: #{kcat_forward.1} parent=11 // pred_check_branch
          %387 = sbr.rel (%p385) target = $region36
        $region35: #{kcat_forward.1} parent=11 // pred_region
          _
        $region36: #{kcat_forward.1} parent=11 // pred_fallthru
          _
        // Predicated region
        $region37: #{kcat_forward.1} parent=11 // pred_check
          %p388 = pneg %p258
        $region38: #{kcat_forward.1} parent=11 // pred_check_branch
          %390 = sbr.rel (%p388) target = $region40
        $region39: #{kcat_forward.1} parent=11 // pred_region
          _
        $region40: #{kcat_forward.1} parent=11 // pred_fallthru
          _
        // Predicated region
        $region41: #{kcat_forward.1} parent=11 // pred_check
          %p391 = pneg %p279
        $region42: #{kcat_forward.1} parent=11 // pred_check_branch
          %393 = sbr.rel (%p391) target = $region44
        $region43: #{kcat_forward.1} parent=11 // pred_region
          _
        $region44: #{kcat_forward.1} parent=11 // pred_fallthru
          _
        // Predicated region
        $region45: #{kcat_forward.1} parent=11 // pred_check
          %p394 = pneg %p300
        $region46: #{kcat_forward.1} parent=11 // pred_check_branch
          %396 = sbr.rel (%p394) target = $region48
        $region47: #{kcat_forward.1} parent=11 // pred_region
          _
        $region48: #{kcat_forward.1} parent=11 // pred_fallthru
          _
        // Predicated region
        $region49: #{kcat_forward.1} parent=11 // pred_check
          %p397 = pneg %p321
        $region50: #{kcat_forward.1} parent=11 // pred_check_branch
          %399 = sbr.rel (%p397) target = $region52
        $region51: #{kcat_forward.1} parent=11 // pred_region
          _
        $region52: #{kcat_forward.1} parent=11 // pred_fallthru
          _
      $region12: #{kcat_forward.1} parent=5 // pred_fallthru
        _
      %p400 = scmp.lt.s32.totalorder %s33, 4
      // Predicated region
      $region53: #{kcat_forward.1} parent=5 // pred_check
        %p401 = pneg %p400
      $region54: #{kcat_forward.1} parent=5 // pred_check_branch
        %403 = sbr.rel (%p401) target = $region56
      $region55: #{kcat_forward.1} parent=5 // pred_region
        // Predicated region
        $region57: #{kcat_forward.1} parent=55 // pred_check
          %p404 = pneg %p53
        $region58: #{kcat_forward.1} parent=55 // pred_check_branch
          %406 = sbr.rel (%p404) target = $region60
        $region59: #{kcat_forward.1} parent=55 // pred_region
          %p407 = scmp.lt.s32.totalorder %s33, 3
          %s408 = scalar_select %p407, %s33, 3
          %s409 = smul.addr %s408, 2
          %s410 = smul.addr %s409, 8
          %s411 = scalar_lea.vmem %s2, %s410
        $region60: #{kcat_forward.1} parent=55 // pred_fallthru
          _
        // Predicated region
        $region61: #{kcat_forward.1} parent=55 // pred_check
          %p412 = pneg %p79
        $region62: #{kcat_forward.1} parent=55 // pred_check_branch
          %414 = sbr.rel (%p412) target = $region64
        $region63: #{kcat_forward.1} parent=55 // pred_region
          %p415 = scmp.lt.s32.totalorder %s33, 3
          %s416 = scalar_select %p415, %s33, 3
          %s417 = smul.addr %s416, 2
          %s418 = smul.addr %s417, 8
          %s419 = scalar_lea.vmem %s3, %s418
        $region64: #{kcat_forward.1} parent=55 // pred_fallthru
          _
        // Predicated region
        $region65: #{kcat_forward.1} parent=55 // pred_check
          %p420 = pneg %p105
        $region66: #{kcat_forward.1} parent=55 // pred_check_branch
          %422 = sbr.rel (%p420) target = $region68
        $region67: #{kcat_forward.1} parent=55 // pred_region
          %p423 = scmp.lt.s32.totalorder %s33, 3
          %s424 = scalar_select %p423, %s33, 3
          %s425 = smul.addr %s424, 2
          %s426 = smul.addr %s425, 8
          %s427 = scalar_lea.vmem %s4, %s426
        $region68: #{kcat_forward.1} parent=55 // pred_fallthru
          _
      $region56: #{kcat_forward.1} parent=5 // pred_fallthru
        _
      %p428 = scmp.le.s32.totalorder 1, %s33
      %p429 = scmp.lt.s32.totalorder %s33, 5
      %p430 = pnand %p428, %p429
      %p431 = pneg %p430
      // Predicated region
      $region69: #{kcat_forward.1} parent=5 // pred_check
        _
      $region70: #{kcat_forward.1} parent=5 // pred_check_branch
        %433 = sbr.rel (%p430) target = $region72
      $region71: #{kcat_forward.1} parent=5 // pred_region
        %s434 = ssub.s32 %s33, 1
        // Predicated region
        $region73: #{kcat_forward.1} parent=71 // pred_check
          %p435 = pneg %p195
        $region74: #{kcat_forward.1} parent=71 // pred_check_branch
          %437 = sbr.rel (%p435) target = $region76
        $region75: #{kcat_forward.1} parent=71 // pred_region
          %438 = dma.done [#allocation8], 16
        $region76: #{kcat_forward.1} parent=71 // pred_fallthru
          _
        %439 = sfence
        %p440 = scmp.lt.s32.totalorder %s38, 3
        %s441 = scalar_select %p440, %s38, 3
        %s442 = smul.addr %s441, 2
        %s443 = smul.addr %s442, 8
        %s444 = scalar_lea.vmem %s2, %s443
        %p445 = pneg %p59
        %p446 = pneg %p56
        %p447 = scmp.lt.s32.totalorder %s38, 3
        %s448 = scalar_select %p447, %s38, 3
        %s449 = smul.addr %s448, 2
        %s450 = smul.addr %s449, 8
        %s451 = scalar_lea.vmem %s3, %s450
        %p452 = pneg %p85
        %p453 = pneg %p82
        %p454 = scmp.lt.s32.totalorder %s38, 3
        %s455 = scalar_select %p454, %s38, 3
        %s456 = smul.addr %s455, 2
        %s457 = smul.addr %s456, 8
        %s458 = scalar_lea.vmem %s4, %s457
        %p459 = pneg %p111
        %p460 = pneg %p108
        %p461 = pneg %p132
        %p462 = pneg %p129
        %p463 = pneg %p153
        %p464 = pneg %p150
        %p465 = pneg %p174
        %p466 = pneg %p171
        %p467 = pneg %p195
        %p468 = pneg %p192
        %p469 = pneg %p216
        %p470 = pneg %p213
        %p471 = pneg %p237
        %p472 = pneg %p234
        %p473 = pneg %p258
        %p474 = pneg %p255
        %p475 = pneg %p279
        %p476 = pneg %p276
        %p477 = pneg %p300
        %p478 = pneg %p297
        %p479 = pneg %p321
        %p480 = pneg %p318
        %p481 = pneg %p347
        %p482 = pneg %p344
        %p483 = scmp.lt.s32.totalorder %s38, 3
        %s484 = scalar_select %p483, %s38, 3
        %s485 = scalar_lea.vmem %s15, %s484
        %p486 = scmp.lt.s32.totalorder %s38, 3
        %s487 = scalar_select %p486, %s38, 3
        %s488 = smul.addr %s487, 2
        %s489 = smul.addr %s488, 8
        %s490 = scalar_lea.vmem %s2, %s489
        %p491 = scmp.lt.s32.totalorder %s38, 3
        %s492 = scalar_select %p491, %s38, 3
        %s493 = smul.addr %s492, 2
        %s494 = smul.addr %s493, 8
        %s495 = scalar_lea.vmem %s3, %s494
        %p496 = scmp.lt.s32.totalorder %s38, 3
        %s497 = scalar_select %p496, %s38, 3
        %s498 = smul.addr %s497, 2
        %s499 = smul.addr %s498, 8
        %s500 = scalar_lea.vmem %s4, %s499
        %p501 = scmp.lt.s32.totalorder %s38, 3
        %s502 = scalar_select %p501, %s38, 3
        %s503 = scalar_lea.vmem %s15, %s502
        %s504 = sld [smem:[#allocation4 + %s38]]
        %s505 = scvt.s32.f32 %s504
        %s506 = sld [smem:[#allocation5 + %s38]]
        %s507 = scvt.s32.f32 %s506
        %v508 = vld [vmem:[%s490] sm:$0xff]
        %v509 = vld [vmem:[%s490 + $0x8] sm:$0xff]
        %v510 = vld [vmem:[%s495] sm:$0xff]
        %v511 = vld [vmem:[%s495 + $0x8] sm:$0xff]
        %v512 = vld [vmem:[%s5] sm:$0xff]
        %v513 = vld [vmem:[%s5 + $0x8] sm:$0xff]
        %v514 = vld [vmem:[%s5 + $0x10] sm:$0xff]
        %v515 = vld [vmem:[%s5 + $0x18] sm:$0xff]
        %v516 = vld [vmem:[%s6] sm:$0x1]
        %v518 = vlaneseq
        %v519 = vshrl.u32 %v518, 7
        %v520 = vsub.s32 0, %v519
        %v521 = vrot.slane %v516, %v520
        %vm523 = vcmask 261120
        %v525 = vsel %vm523, %v508, 0
        %v528 = vsel %vm523, %v509, 0
        %530 = vmatprep.subr.mxu0 0.0
        %531 = vmatpush1.msra.mxu0 0.0
        %532 = vmatprep.subr.mxu0 0.0
        %533 = vmatpush1.msra.mxu0 0.0
        %534 = vmatprep.subr.mxu0 0.0
        %535 = vmatpush1.msra.mxu0 0.0
        %536 = vmatprep.subr.mxu0 0.0
        %537 = vmatpush1.msra.mxu0 0.0
        %538 = vmatprep.subr.mxu0 0.0
        %539 = vmatpush1.msra.mxu0 0.0
        %540 = vmatprep.subr.mxu0 0.0
        %541 = vmatpush1.msra.mxu0 0.0
        %542 = vmatprep.subr.mxu0 0.0
        %543 = vmatpush1.msra.mxu0 0.0
        %544 = vmatprep.subr.mxu0 0.0
        %545 = vmatpush1.msra.mxu0 0.0
        %546 = vmatprep.subr.mxu0 0.0
        %547 = vmatpush1.msra.mxu0 0.0
        %548 = vmatprep.subr.mxu0 0.0
        %549 = vmatpush1.msra.mxu0 0.0
        %550 = vmatprep.subr.mxu0 0.0
        %551 = vmatpush1.msra.mxu0 0.0
        %552 = vmatprep.subr.mxu0 0.0
        %553 = vmatpush1.msra.mxu0 0.0
        %554 = vmatprep.subr.mxu0 0.0
        %555 = vmatpush1.msra.mxu0 %v515
        %556 = vmatprep.subr.mxu0 0.0
        %557 = vmatpush1.msra.mxu0 %v514
        %558 = vmatprep.subr.mxu0 0.0
        %559 = vmatpush1.msra.mxu0 %v513
        %560 = vmatprep.subr.mxu0 0.0
        %561 = vmatpush1.msra.mxu0 %v512
        %562 = vmatprep.subr.mxu0 0.0
        %563 = vmatpush2.msra.mxu0 0.0
        %564 = vmatprep.subr.mxu0 0.0
        %565 = vmatpush2.msra.mxu0 0.0
        %566 = vmatprep.subr.mxu0 0.0
        %567 = vmatpush2.msra.mxu0 0.0
        %568 = vmatprep.subr.mxu0 0.0
        %569 = vmatpush2.msra.mxu0 0.0
        %570 = vmatprep.subr.mxu0 0.0
        %571 = vmatpush2.msra.mxu0 0.0
        %572 = vmatprep.subr.mxu0 0.0
        %573 = vmatpush2.msra.mxu0 0.0
        %574 = vmatprep.subr.mxu0 0.0
        %575 = vmatpush2.msra.mxu0 0.0
        %576 = vmatprep.subr.mxu0 0.0
        %577 = vmatpush2.msra.mxu0 0.0
        %578 = vmatprep.subr.mxu0 0.0
        %579 = vmatpush2.msra.mxu0 0.0
        %580 = vmatprep.subr.mxu0 0.0
        %581 = vmatpush2.msra.mxu0 0.0
        %582 = vmatprep.subr.mxu0 0.0
        %583 = vmatpush2.msra.mxu0 0.0
        %584 = vmatprep.subr.mxu0 0.0
        %585 = vmatpush2.msra.mxu0 0.0
        %586 = vmatprep.subr.mxu0 0.0
        %587 = vmatpush2.msra.mxu0 0.0
        %588 = vmatprep.subr.mxu0 0.0
        %589 = vmatpush2.msra.mxu0 0.0
        %590 = vmatprep.subr.mxu0 0.0
        %591 = vmatpush2.msra.mxu0 0.0
        %592 = vmatprep.subr.mxu0 0.0
        %593 = vmatpush2.msra.mxu0 0.0
        %594 = vmatprep.mubr.f32.mxu0 0.0
        %595 = vmatmul.mubr.f32.gmra.mxu0 %v525
        %v596 = vpop.f32.mrf.mxu0
        %v597 = vadd.f32 %v521, %v596
        %v598 = vpop.f32.mrf.mxu0
        %599 = vmatprep.mubr.f32.mxu0 0.0
        %600 = vmatmul.mubr.f32.gmra.mxu0 %v528
        %v601 = vpop.f32.mrf.mxu0
        %v602 = vadd.f32 %v521, %v601
        %v603 = vpop.f32.mrf.mxu0
        %604 = vdwg.mxu0
        %v605 = vmax.f32 %v597, 0.0
        %v606 = vmax.f32 %v602, 0.0
        %vm607 = vcmask 130048
        %v609 = vsel %vm607, %v510, 0
        %v612 = vsel %vm607, %v511, 0
        %614 = vmatprep.subr.mxu0 0.0
        %615 = vmatpush1.msra.mxu0 0.0
        %616 = vmatprep.subr.mxu0 0.0
        %617 = vmatpush1.msra.mxu0 0.0
        %618 = vmatprep.subr.mxu0 0.0
        %619 = vmatpush1.msra.mxu0 0.0
        %620 = vmatprep.subr.mxu0 0.0
        %621 = vmatpush1.msra.mxu0 0.0
        %622 = vmatprep.subr.mxu0 0.0
        %623 = vmatpush1.msra.mxu0 0.0
        %624 = vmatprep.subr.mxu0 0.0
        %625 = vmatpush1.msra.mxu0 0.0
        %626 = vmatprep.subr.mxu0 0.0
        %627 = vmatpush1.msra.mxu0 0.0
        %628 = vmatprep.subr.mxu0 0.0
        %629 = vmatpush1.msra.mxu0 0.0
        %630 = vmatprep.subr.mxu0 0.0
        %631 = vmatpush1.msra.mxu0 0.0
        %632 = vmatprep.subr.mxu0 0.0
        %633 = vmatpush1.msra.mxu0 0.0
        %634 = vmatprep.subr.mxu0 0.0
        %635 = vmatpush1.msra.mxu0 0.0
        %636 = vmatprep.subr.mxu0 0.0
        %637 = vmatpush1.msra.mxu0 0.0
        %638 = vmatprep.subr.mxu0 0.0
        %639 = vmatpush1.msra.mxu0 0.0
        %640 = vmatprep.subr.mxu0 0.0
        %641 = vmatpush1.msra.mxu0 0.0
        %642 = vmatprep.subr.mxu0 0.0
        %643 = vmatpush1.msra.mxu0 %v606
        %644 = vmatprep.subr.mxu0 0.0
        %645 = vmatpush1.msra.mxu0 %v605
        %646 = vmatprep.subr.mxu0 0.0
        %647 = vmatpush2.msra.mxu0 0.0
        %648 = vmatprep.subr.mxu0 0.0
        %649 = vmatpush2.msra.mxu0 0.0
        %650 = vmatprep.subr.mxu0 0.0
        %651 = vmatpush2.msra.mxu0 0.0
        %652 = vmatprep.subr.mxu0 0.0
        %653 = vmatpush2.msra.mxu0 0.0
        %654 = vmatprep.subr.mxu0 0.0
        %655 = vmatpush2.msra.mxu0 0.0
        %656 = vmatprep.subr.mxu0 0.0
        %657 = vmatpush2.msra.mxu0 0.0
        %658 = vmatprep.subr.mxu0 0.0
        %659 = vmatpush2.msra.mxu0 0.0
        %660 = vmatprep.subr.mxu0 0.0
        %661 = vmatpush2.msra.mxu0 0.0
        %662 = vmatprep.subr.mxu0 0.0
        %663 = vmatpush2.msra.mxu0 0.0
        %664 = vmatprep.subr.mxu0 0.0
        %665 = vmatpush2.msra.mxu0 0.0
        %666 = vmatprep.subr.mxu0 0.0
        %667 = vmatpush2.msra.mxu0 0.0
        %668 = vmatprep.subr.mxu0 0.0
        %669 = vmatpush2.msra.mxu0 0.0
        %670 = vmatprep.subr.mxu0 0.0
        %671 = vmatpush2.msra.mxu0 0.0
        %672 = vmatprep.subr.mxu0 0.0
        %673 = vmatpush2.msra.mxu0 0.0
        %674 = vmatprep.subr.mxu0 0.0
        %675 = vmatpush2.msra.mxu0 0.0
        %676 = vmatprep.subr.mxu0 0.0
        %677 = vmatpush2.msra.mxu0 0.0
        %678 = vmatprep.mubr.f32.mxu0 0.0
        %679 = vmatmul.mubr.f32.gmra.mxu0 %v609
        %v680 = vpop.f32.mrf.mxu0
        %v681 = vadd.f32 0.0, %v680
        %v682 = vpop.f32.mrf.mxu0
        %683 = vmatprep.mubr.f32.mxu0 0.0
        %684 = vmatmul.mubr.f32.gmra.mxu0 %v612
        %v685 = vpop.f32.mrf.mxu0
        %v686 = vadd.f32 0.0, %v685
        %v687 = vpop.f32.mrf.mxu0
        %688 = vdwg.mxu0
        %v689 = vadd.f32 %v508, %v681
        %v690 = vadd.f32 %v509, %v686
        %s691 = scalar_lea.vmem %s5, 32
        %v692 = vld [vmem:[%s691] sm:$0xff]
        %v693 = vld [vmem:[%s691 + $0x8] sm:$0xff]
        %v694 = vld [vmem:[%s691 + $0x10] sm:$0xff]
        %v695 = vld [vmem:[%s691 + $0x18] sm:$0xff]
        %s696 = scalar_lea.vmem %s6, 1
        %v697 = vld [vmem:[%s696] sm:$0x1]
        %v699 = vlaneseq
        %v700 = vshrl.u32 %v699, 7
        %v701 = vsub.s32 0, %v700
        %v702 = vrot.slane %v697, %v701
        %v705 = vsel %vm523, %v689, 0
        %v708 = vsel %vm523, %v690, 0
        %710 = vmatprep.subr.mxu0 0.0
        %711 = vmatpush1.msra.mxu0 0.0
        %712 = vmatprep.subr.mxu0 0.0
        %713 = vmatpush1.msra.mxu0 0.0
        %714 = vmatprep.subr.mxu0 0.0
        %715 = vmatpush1.msra.mxu0 0.0
        %716 = vmatprep.subr.mxu0 0.0
        %717 = vmatpush1.msra.mxu0 0.0
        %718 = vmatprep.subr.mxu0 0.0
        %719 = vmatpush1.msra.mxu0 0.0
        %720 = vmatprep.subr.mxu0 0.0
        %721 = vmatpush1.msra.mxu0 0.0
        %722 = vmatprep.subr.mxu0 0.0
        %723 = vmatpush1.msra.mxu0 0.0
        %724 = vmatprep.subr.mxu0 0.0
        %725 = vmatpush1.msra.mxu0 0.0
        %726 = vmatprep.subr.mxu0 0.0
        %727 = vmatpush1.msra.mxu0 0.0
        %728 = vmatprep.subr.mxu0 0.0
        %729 = vmatpush1.msra.mxu0 0.0
        %730 = vmatprep.subr.mxu0 0.0
        %731 = vmatpush1.msra.mxu0 0.0
        %732 = vmatprep.subr.mxu0 0.0
        %733 = vmatpush1.msra.mxu0 0.0
        %734 = vmatprep.subr.mxu0 0.0
        %735 = vmatpush1.msra.mxu0 %v695
        %736 = vmatprep.subr.mxu0 0.0
        %737 = vmatpush1.msra.mxu0 %v694
        %738 = vmatprep.subr.mxu0 0.0
        %739 = vmatpush1.msra.mxu0 %v693
        %740 = vmatprep.subr.mxu0 0.0
        %741 = vmatpush1.msra.mxu0 %v692
        %742 = vmatprep.subr.mxu0 0.0
        %743 = vmatpush2.msra.mxu0 0.0
        %744 = vmatprep.subr.mxu0 0.0
        %745 = vmatpush2.msra.mxu0 0.0
        %746 = vmatprep.subr.mxu0 0.0
        %747 = vmatpush2.msra.mxu0 0.0
        %748 = vmatprep.subr.mxu0 0.0
        %749 = vmatpush2.msra.mxu0 0.0
        %750 = vmatprep.subr.mxu0 0.0
        %751 = vmatpush2.msra.mxu0 0.0
        %752 = vmatprep.subr.mxu0 0.0
        %753 = vmatpush2.msra.mxu0 0.0
        %754 = vmatprep.subr.mxu0 0.0
        %755 = vmatpush2.msra.mxu0 0.0
        %756 = vmatprep.subr.mxu0 0.0
        %757 = vmatpush2.msra.mxu0 0.0
        %758 = vmatprep.subr.mxu0 0.0
        %759 = vmatpush2.msra.mxu0 0.0
        %760 = vmatprep.subr.mxu0 0.0
        %761 = vmatpush2.msra.mxu0 0.0
        %762 = vmatprep.subr.mxu0 0.0
        %763 = vmatpush2.msra.mxu0 0.0
        %764 = vmatprep.subr.mxu0 0.0
        %765 = vmatpush2.msra.mxu0 0.0
        %766 = vmatprep.subr.mxu0 0.0
        %767 = vmatpush2.msra.mxu0 0.0
        %768 = vmatprep.subr.mxu0 0.0
        %769 = vmatpush2.msra.mxu0 0.0
        %770 = vmatprep.subr.mxu0 0.0
        %771 = vmatpush2.msra.mxu0 0.0
        %772 = vmatprep.subr.mxu0 0.0
        %773 = vmatpush2.msra.mxu0 0.0
        %774 = vmatprep.mubr.f32.mxu0 0.0
        %775 = vmatmul.mubr.f32.gmra.mxu0 %v705
        %v776 = vpop.f32.mrf.mxu0
        %v777 = vadd.f32 %v702, %v776
        %v778 = vpop.f32.mrf.mxu0
        %779 = vmatprep.mubr.f32.mxu0 0.0
        %780 = vmatmul.mubr.f32.gmra.mxu0 %v708
        %v781 = vpop.f32.mrf.mxu0
        %v782 = vadd.f32 %v702, %v781
        %v783 = vpop.f32.mrf.mxu0
        %784 = vdwg.mxu0
        %v785 = vmax.f32 %v777, 0.0
        %v786 = vmax.f32 %v782, 0.0
        %787 = vmatprep.subr.mxu0 0.0
        %788 = vmatpush1.msra.mxu0 0.0
        %789 = vmatprep.subr.mxu0 0.0
        %790 = vmatpush1.msra.mxu0 0.0
        %791 = vmatprep.subr.mxu0 0.0
        %792 = vmatpush1.msra.mxu0 0.0
        %793 = vmatprep.subr.mxu0 0.0
        %794 = vmatpush1.msra.mxu0 0.0
        %795 = vmatprep.subr.mxu0 0.0
        %796 = vmatpush1.msra.mxu0 0.0
        %797 = vmatprep.subr.mxu0 0.0
        %798 = vmatpush1.msra.mxu0 0.0
        %799 = vmatprep.subr.mxu0 0.0
        %800 = vmatpush1.msra.mxu0 0.0
        %801 = vmatprep.subr.mxu0 0.0
        %802 = vmatpush1.msra.mxu0 0.0
        %803 = vmatprep.subr.mxu0 0.0
        %804 = vmatpush1.msra.mxu0 0.0
        %805 = vmatprep.subr.mxu0 0.0
        %806 = vmatpush1.msra.mxu0 0.0
        %807 = vmatprep.subr.mxu0 0.0
        %808 = vmatpush1.msra.mxu0 0.0
        %809 = vmatprep.subr.mxu0 0.0
        %810 = vmatpush1.msra.mxu0 0.0
        %811 = vmatprep.subr.mxu0 0.0
        %812 = vmatpush1.msra.mxu0 0.0
        %813 = vmatprep.subr.mxu0 0.0
        %814 = vmatpush1.msra.mxu0 0.0
        %815 = vmatprep.subr.mxu0 0.0
        %816 = vmatpush1.msra.mxu0 %v786
        %817 = vmatprep.subr.mxu0 0.0
        %818 = vmatpush1.msra.mxu0 %v785
        %819 = vmatprep.subr.mxu0 0.0
        %820 = vmatpush2.msra.mxu0 0.0
        %821 = vmatprep.subr.mxu0 0.0
        %822 = vmatpush2.msra.mxu0 0.0
        %823 = vmatprep.subr.mxu0 0.0
        %824 = vmatpush2.msra.mxu0 0.0
        %825 = vmatprep.subr.mxu0 0.0
        %826 = vmatpush2.msra.mxu0 0.0
        %827 = vmatprep.subr.mxu0 0.0
        %828 = vmatpush2.msra.mxu0 0.0
        %829 = vmatprep.subr.mxu0 0.0
        %830 = vmatpush2.msra.mxu0 0.0
        %831 = vmatprep.subr.mxu0 0.0
        %832 = vmatpush2.msra.mxu0 0.0
        %833 = vmatprep.subr.mxu0 0.0
        %834 = vmatpush2.msra.mxu0 0.0
        %835 = vmatprep.subr.mxu0 0.0
        %836 = vmatpush2.msra.mxu0 0.0
        %837 = vmatprep.subr.mxu0 0.0
        %838 = vmatpush2.msra.mxu0 0.0
        %839 = vmatprep.subr.mxu0 0.0
        %840 = vmatpush2.msra.mxu0 0.0
        %841 = vmatprep.subr.mxu0 0.0
        %842 = vmatpush2.msra.mxu0 0.0
        %843 = vmatprep.subr.mxu0 0.0
        %844 = vmatpush2.msra.mxu0 0.0
        %845 = vmatprep.subr.mxu0 0.0
        %846 = vmatpush2.msra.mxu0 0.0
        %847 = vmatprep.subr.mxu0 0.0
        %848 = vmatpush2.msra.mxu0 0.0
        %849 = vmatprep.subr.mxu0 0.0
        %850 = vmatpush2.msra.mxu0 0.0
        %851 = vmatprep.mubr.f32.mxu0 0.0
        %852 = vmatmul.mubr.f32.gmra.mxu0 %v609
        %v853 = vpop.f32.mrf.mxu0
        %v854 = vadd.f32 0.0, %v853
        %v855 = vpop.f32.mrf.mxu0
        %856 = vmatprep.mubr.f32.mxu0 0.0
        %857 = vmatmul.mubr.f32.gmra.mxu0 %v612
        %v858 = vpop.f32.mrf.mxu0
        %v859 = vadd.f32 0.0, %v858
        %v860 = vpop.f32.mrf.mxu0
        %861 = vdwg.mxu0
        %v862 = vadd.f32 %v689, %v854
        %v863 = vadd.f32 %v690, %v859
        %s864 = scalar_lea.vmem %s5, 64
        %v865 = vld [vmem:[%s864] sm:$0xff]
        %v866 = vld [vmem:[%s864 + $0x8] sm:$0xff]
        %v867 = vld [vmem:[%s864 + $0x10] sm:$0xff]
        %v868 = vld [vmem:[%s864 + $0x18] sm:$0xff]
        %s869 = scalar_lea.vmem %s6, 2
        %v870 = vld [vmem:[%s869] sm:$0x1]
        %v872 = vlaneseq
        %v873 = vshrl.u32 %v872, 7
        %v874 = vsub.s32 0, %v873
        %v875 = vrot.slane %v870, %v874
        %v878 = vsel %vm523, %v862, 0
        %v881 = vsel %vm523, %v863, 0
        %883 = vmatprep.subr.mxu0 0.0
        %884 = vmatpush1.msra.mxu0 0.0
        %885 = vmatprep.subr.mxu0 0.0
        %886 = vmatpush1.msra.mxu0 0.0
        %887 = vmatprep.subr.mxu0 0.0
        %888 = vmatpush1.msra.mxu0 0.0
        %889 = vmatprep.subr.mxu0 0.0
        %890 = vmatpush1.msra.mxu0 0.0
        %891 = vmatprep.subr.mxu0 0.0
        %892 = vmatpush1.msra.mxu0 0.0
        %893 = vmatprep.subr.mxu0 0.0
        %894 = vmatpush1.msra.mxu0 0.0
        %895 = vmatprep.subr.mxu0 0.0
        %896 = vmatpush1.msra.mxu0 0.0
        %897 = vmatprep.subr.mxu0 0.0
        %898 = vmatpush1.msra.mxu0 0.0
        %899 = vmatprep.subr.mxu0 0.0
        %900 = vmatpush1.msra.mxu0 0.0
        %901 = vmatprep.subr.mxu0 0.0
        %902 = vmatpush1.msra.mxu0 0.0
        %903 = vmatprep.subr.mxu0 0.0
        %904 = vmatpush1.msra.mxu0 0.0
        %905 = vmatprep.subr.mxu0 0.0
        %906 = vmatpush1.msra.mxu0 0.0
        %907 = vmatprep.subr.mxu0 0.0
        %908 = vmatpush1.msra.mxu0 %v868
        %909 = vmatprep.subr.mxu0 0.0
        %910 = vmatpush1.msra.mxu0 %v867
        %911 = vmatprep.subr.mxu0 0.0
        %912 = vmatpush1.msra.mxu0 %v866
        %913 = vmatprep.subr.mxu0 0.0
        %914 = vmatpush1.msra.mxu0 %v865
        %915 = vmatprep.subr.mxu0 0.0
        %916 = vmatpush2.msra.mxu0 0.0
        %917 = vmatprep.subr.mxu0 0.0
        %918 = vmatpush2.msra.mxu0 0.0
        %919 = vmatprep.subr.mxu0 0.0
        %920 = vmatpush2.msra.mxu0 0.0
        %921 = vmatprep.subr.mxu0 0.0
        %922 = vmatpush2.msra.mxu0 0.0
        %923 = vmatprep.subr.mxu0 0.0
        %924 = vmatpush2.msra.mxu0 0.0
        %925 = vmatprep.subr.mxu0 0.0
        %926 = vmatpush2.msra.mxu0 0.0
        %927 = vmatprep.subr.mxu0 0.0
        %928 = vmatpush2.msra.mxu0 0.0
        %929 = vmatprep.subr.mxu0 0.0
        %930 = vmatpush2.msra.mxu0 0.0
        %931 = vmatprep.subr.mxu0 0.0
        %932 = vmatpush2.msra.mxu0 0.0
        %933 = vmatprep.subr.mxu0 0.0
        %934 = vmatpush2.msra.mxu0 0.0
        %935 = vmatprep.subr.mxu0 0.0
        %936 = vmatpush2.msra.mxu0 0.0
        %937 = vmatprep.subr.mxu0 0.0
        %938 = vmatpush2.msra.mxu0 0.0
        %939 = vmatprep.subr.mxu0 0.0
        %940 = vmatpush2.msra.mxu0 0.0
        %941 = vmatprep.subr.mxu0 0.0
        %942 = vmatpush2.msra.mxu0 0.0
        %943 = vmatprep.subr.mxu0 0.0
        %944 = vmatpush2.msra.mxu0 0.0
        %945 = vmatprep.subr.mxu0 0.0
        %946 = vmatpush2.msra.mxu0 0.0
        %947 = vmatprep.mubr.f32.mxu0 0.0
        %948 = vmatmul.mubr.f32.gmra.mxu0 %v878
        %v949 = vpop.f32.mrf.mxu0
        %v950 = vadd.f32 %v875, %v949
        %v951 = vpop.f32.mrf.mxu0
        %952 = vmatprep.mubr.f32.mxu0 0.0
        %953 = vmatmul.mubr.f32.gmra.mxu0 %v881
        %v954 = vpop.f32.mrf.mxu0
        %v955 = vadd.f32 %v875, %v954
        %v956 = vpop.f32.mrf.mxu0
        %957 = vdwg.mxu0
        %v958 = vmax.f32 %v950, 0.0
        %v959 = vmax.f32 %v955, 0.0
        %960 = vmatprep.subr.mxu0 0.0
        %961 = vmatpush1.msra.mxu0 0.0
        %962 = vmatprep.subr.mxu0 0.0
        %963 = vmatpush1.msra.mxu0 0.0
        %964 = vmatprep.subr.mxu0 0.0
        %965 = vmatpush1.msra.mxu0 0.0
        %966 = vmatprep.subr.mxu0 0.0
        %967 = vmatpush1.msra.mxu0 0.0
        %968 = vmatprep.subr.mxu0 0.0
        %969 = vmatpush1.msra.mxu0 0.0
        %970 = vmatprep.subr.mxu0 0.0
        %971 = vmatpush1.msra.mxu0 0.0
        %972 = vmatprep.subr.mxu0 0.0
        %973 = vmatpush1.msra.mxu0 0.0
        %974 = vmatprep.subr.mxu0 0.0
        %975 = vmatpush1.msra.mxu0 0.0
        %976 = vmatprep.subr.mxu0 0.0
        %977 = vmatpush1.msra.mxu0 0.0
        %978 = vmatprep.subr.mxu0 0.0
        %979 = vmatpush1.msra.mxu0 0.0
        %980 = vmatprep.subr.mxu0 0.0
        %981 = vmatpush1.msra.mxu0 0.0
        %982 = vmatprep.subr.mxu0 0.0
        %983 = vmatpush1.msra.mxu0 0.0
        %984 = vmatprep.subr.mxu0 0.0
        %985 = vmatpush1.msra.mxu0 0.0
        %986 = vmatprep.subr.mxu0 0.0
        %987 = vmatpush1.msra.mxu0 0.0
        %988 = vmatprep.subr.mxu0 0.0
        %989 = vmatpush1.msra.mxu0 %v959
        %990 = vmatprep.subr.mxu0 0.0
        %991 = vmatpush1.msra.mxu0 %v958
        %992 = vmatprep.subr.mxu0 0.0
        %993 = vmatpush2.msra.mxu0 0.0
        %994 = vmatprep.subr.mxu0 0.0
        %995 = vmatpush2.msra.mxu0 0.0
        %996 = vmatprep.subr.mxu0 0.0
        %997 = vmatpush2.msra.mxu0 0.0
        %998 = vmatprep.subr.mxu0 0.0
        %999 = vmatpush2.msra.mxu0 0.0
        %1000 = vmatprep.subr.mxu0 0.0
        %1001 = vmatpush2.msra.mxu0 0.0
        %1002 = vmatprep.subr.mxu0 0.0
        %1003 = vmatpush2.msra.mxu0 0.0
        %1004 = vmatprep.subr.mxu0 0.0
        %1005 = vmatpush2.msra.mxu0 0.0
        %1006 = vmatprep.subr.mxu0 0.0
        %1007 = vmatpush2.msra.mxu0 0.0
        %1008 = vmatprep.subr.mxu0 0.0
        %1009 = vmatpush2.msra.mxu0 0.0
        %1010 = vmatprep.subr.mxu0 0.0
        %1011 = vmatpush2.msra.mxu0 0.0
        %1012 = vmatprep.subr.mxu0 0.0
        %1013 = vmatpush2.msra.mxu0 0.0
        %1014 = vmatprep.subr.mxu0 0.0
        %1015 = vmatpush2.msra.mxu0 0.0
        %1016 = vmatprep.subr.mxu0 0.0
        %1017 = vmatpush2.msra.mxu0 0.0
        %1018 = vmatprep.subr.mxu0 0.0
        %1019 = vmatpush2.msra.mxu0 0.0
        %1020 = vmatprep.subr.mxu0 0.0
        %1021 = vmatpush2.msra.mxu0 0.0
        %1022 = vmatprep.subr.mxu0 0.0
        %1023 = vmatpush2.msra.mxu0 0.0
        %1024 = vmatprep.mubr.f32.mxu0 0.0
        %1025 = vmatmul.mubr.f32.gmra.mxu0 %v609
        %v1026 = vpop.f32.mrf.mxu0
        %v1027 = vadd.f32 0.0, %v1026
        %v1028 = vpop.f32.mrf.mxu0
        %1029 = vmatprep.mubr.f32.mxu0 0.0
        %1030 = vmatmul.mubr.f32.gmra.mxu0 %v612
        %v1031 = vpop.f32.mrf.mxu0
        %v1032 = vadd.f32 0.0, %v1031
        %v1033 = vpop.f32.mrf.mxu0
        %1034 = vdwg.mxu0
        %v1035 = vadd.f32 %v862, %v1027
        %v1036 = vadd.f32 %v863, %v1032
        %v1037 = vsel %vm523, %v1035, 0.0
        %v1038 = vsel %vm523, %v1036, 0.0
        %v1039 = vadd.f32 %v1037, %v1038
        %v1040 = vrot.slane %v1039, 4
        %v1041 = vadd.f32 %v1039, %v1040
        %v1042 = vrot.slane %v1041, 2
        %v1043 = vadd.f32 %v1041, %v1042
        %v1044 = vrot.slane %v1043, 1
        %v1045 = vadd.f32 %v1043, %v1044
        %v1046 = vstv %s505
        %v1047 = vrcp.pop %v1046
        %v1048 = vmul.f32 %v1045, %v1047
        %v1049 = vlaneseq
        %v1050 = vshrl.u32 %v1049, 7
        %v1051 = vadd.s32 %v1050, 8
        %v1052 = vstv %s506
        %vm1053 = vcmp.lt.s32.totalorder %v1050, %v1052
        %vm1054 = vcmp.lt.s32.totalorder %v1051, %v1052
        %1055 = vst.msk [vmem:[#allocation2] sm:$0xff] %vm523, 0.0
        %1056 = vst.msk [vmem:[#allocation2 + $0x8] sm:$0xff] %vm523, 0.0
        %1057 = vst.msk [vmem:[#allocation2 + $0x10] sm:$0xff] %vm523, 0.0
        %v1058 = vld [vmem:[%s500] sm:$0xff]
        %v1059 = vld [vmem:[%s500 + $0x8] sm:$0xff]
        %1060 = vst.msk [vmem:[#allocation2 + $0x2] sm:$0xff] %vm523, %v1058
        %1061 = vst.msk [vmem:[#allocation2 + $0xa] sm:$0xff] %vm523, %v1059
        %v1062 = vld [vmem:[#allocation2] sm:$0xff]
        %v1063 = vld [vmem:[#allocation2 + $0x8] sm:$0xff]
        %v1064 = vld [vmem:[#allocation2 + $0x1] sm:$0xff]
        %v1065 = vld [vmem:[#allocation2 + $0x9] sm:$0xff]
        %v1066 = vld [vmem:[#allocation2 + $0x2] sm:$0xff]
        %v1067 = vld [vmem:[#allocation2 + $0xa] sm:$0xff]
        %v1068 = vld [vmem:[#allocation2 + $0x3] sm:$0xff]
        %v1069 = vld [vmem:[#allocation2 + $0xb] sm:$0xff]
        %v1070 = vld [vmem:[#allocation2 + $0x4] sm:$0xff]
        %v1071 = vld [vmem:[#allocation2 + $0xc] sm:$0xff]
        %1074 = vrot.lane.b32.xlu0 %v1064, 32
        %v1075 = vpop.permute.xlu0 %1074
        %1076 = vrot.lane.b32.xlu0 %v1065, 32
        %v1077 = vpop.permute.xlu0 %1076
        %1082 = vrot.lane.b32.xlu0 %v1066, 64
        %v1083 = vpop.permute.xlu0 %1082
        %1084 = vrot.lane.b32.xlu0 %v1067, 64
        %v1085 = vpop.permute.xlu0 %1084
        %1090 = vrot.lane.b32.xlu0 %v1068, 96
        %v1091 = vpop.permute.xlu0 %1090
        %1092 = vrot.lane.b32.xlu0 %v1069, 96
        %v1093 = vpop.permute.xlu0 %1092
        %v1096 = vsel %vm523, %v1062, %v1075
        %v1097 = vsel %vm523, %v1063, %v1077
        %vm1098 = vcmask 523264
        %v1099 = vsel %vm1098, %v1096, %v1083
        %v1100 = vsel %vm1098, %v1097, %v1085
        %vm1101 = vcmask 785408
        %v1102 = vsel %vm1101, %v1099, %v1091
        %v1103 = vsel %vm1101, %v1100, %v1093
        %v1104 = vld [vmem:[%s7] sm:$0xff]
        %v1105 = vld [vmem:[%s7 + $0x8] sm:$0xff]
        %v1106 = vld [vmem:[%s7 + $0x10] sm:$0xff]
        %v1107 = vld [vmem:[%s7 + $0x18] sm:$0xff]
        %v1108 = vld [vmem:[%s7 + $0x20] sm:$0xff]
        %v1109 = vld [vmem:[%s7 + $0x28] sm:$0xff]
        %v1110 = vld [vmem:[%s7 + $0x30] sm:$0xff]
        %v1111 = vld [vmem:[%s7 + $0x38] sm:$0xff]
        %v1112 = vld [vmem:[%s7 + $0x40] sm:$0xff]
        %v1113 = vld [vmem:[%s7 + $0x48] sm:$0xff]
        %v1114 = vld [vmem:[%s7 + $0x50] sm:$0xff]
        %v1115 = vld [vmem:[%s7 + $0x58] sm:$0xff]
        %v1116 = vld [vmem:[%s7 + $0x60] sm:$0xff]
        %v1117 = vld [vmem:[%s7 + $0x68] sm:$0xff]
        %v1118 = vld [vmem:[%s7 + $0x70] sm:$0xff]
        %v1119 = vld [vmem:[%s7 + $0x78] sm:$0xff]
        %v1120 = vld [vmem:[%s7 + $0x80] sm:$0xff]
        %v1121 = vld [vmem:[%s7 + $0x88] sm:$0xff]
        %v1122 = vld [vmem:[%s7 + $0x90] sm:$0xff]
        %v1123 = vld [vmem:[%s7 + $0x98] sm:$0xff]
        %s1124 = sld [smem:[#allocation7]]
        %v1125 = vstv %s1124
        %v1127 = vsel %vm523, %v1070, 0
        %v1130 = vsel %vm523, %v1071, 0
        %1132 = vmatprep.subr.mxu0 0.0
        %1133 = vmatpush1.msra.mxu0 %v1119
        %1134 = vmatprep.subr.mxu0 0.0
        %1135 = vmatpush1.msra.mxu0 %v1118
        %1136 = vmatprep.subr.mxu0 0.0
        %1137 = vmatpush1.msra.mxu0 %v1117
        %1138 = vmatprep.subr.mxu0 0.0
        %1139 = vmatpush1.msra.mxu0 %v1116
        %1140 = vmatprep.subr.mxu0 0.0
        %1141 = vmatpush1.msra.mxu0 %v1115
        %1142 = vmatprep.subr.mxu0 0.0
        %1143 = vmatpush1.msra.mxu0 %v1114
        %1144 = vmatprep.subr.mxu0 0.0
        %1145 = vmatpush1.msra.mxu0 %v1113
        %1146 = vmatprep.subr.mxu0 0.0
        %1147 = vmatpush1.msra.mxu0 %v1112
        %1148 = vmatprep.subr.mxu0 0.0
        %1149 = vmatpush1.msra.mxu0 %v1111
        %1150 = vmatprep.subr.mxu0 0.0
        %1151 = vmatpush1.msra.mxu0 %v1110
        %1152 = vmatprep.subr.mxu0 0.0
        %1153 = vmatpush1.msra.mxu0 %v1109
        %1154 = vmatprep.subr.mxu0 0.0
        %1155 = vmatpush1.msra.mxu0 %v1108
        %1156 = vmatprep.subr.mxu0 0.0
        %1157 = vmatpush1.msra.mxu0 %v1107
        %1158 = vmatprep.subr.mxu0 0.0
        %1159 = vmatpush1.msra.mxu0 %v1106
        %1160 = vmatprep.subr.mxu0 0.0
        %1161 = vmatpush1.msra.mxu0 %v1105
        %1162 = vmatprep.subr.mxu0 0.0
        %1163 = vmatpush1.msra.mxu0 %v1104
        %1164 = vmatprep.subr.mxu0 0.0
        %1165 = vmatpush2.msra.mxu0 0.0
        %1166 = vmatprep.subr.mxu0 0.0
        %1167 = vmatpush2.msra.mxu0 0.0
        %1168 = vmatprep.subr.mxu0 0.0
        %1169 = vmatpush2.msra.mxu0 0.0
        %1170 = vmatprep.subr.mxu0 0.0
        %1171 = vmatpush2.msra.mxu0 0.0
        %1172 = vmatprep.subr.mxu0 0.0
        %1173 = vmatpush2.msra.mxu0 0.0
        %1174 = vmatprep.subr.mxu0 0.0
        %1175 = vmatpush2.msra.mxu0 0.0
        %1176 = vmatprep.subr.mxu0 0.0
        %1177 = vmatpush2.msra.mxu0 0.0
        %1178 = vmatprep.subr.mxu0 0.0
        %1179 = vmatpush2.msra.mxu0 0.0
        %1180 = vmatprep.subr.mxu0 0.0
        %1181 = vmatpush2.msra.mxu0 0.0
        %1182 = vmatprep.subr.mxu0 0.0
        %1183 = vmatpush2.msra.mxu0 0.0
        %1184 = vmatprep.subr.mxu0 0.0
        %1185 = vmatpush2.msra.mxu0 0.0
        %1186 = vmatprep.subr.mxu0 0.0
        %1187 = vmatpush2.msra.mxu0 0.0
        %1188 = vmatprep.subr.mxu0 0.0
        %1189 = vmatpush2.msra.mxu0 %v1123
        %1190 = vmatprep.subr.mxu0 0.0
        %1191 = vmatpush2.msra.mxu0 %v1122
        %1192 = vmatprep.subr.mxu0 0.0
        %1193 = vmatpush2.msra.mxu0 %v1121
        %1194 = vmatprep.subr.mxu0 0.0
        %1195 = vmatpush2.msra.mxu0 %v1120
        %1196 = vmatprep.mubr.f32.mxu0 %v1127
        %1197 = vmatmul.mubr.f32.gmra.mxu0 %v1102
        %v1198 = vpop.f32.mrf.mxu0
        %v1199 = vadd.f32 %v1125, %v1198
        %v1200 = vpop.f32.mrf.mxu0
        %1201 = vmatprep.mubr.f32.mxu0 %v1130
        %1202 = vmatmul.mubr.f32.gmra.mxu0 %v1103
        %v1203 = vpop.f32.mrf.mxu0
        %v1204 = vadd.f32 %v1125, %v1203
        %v1205 = vpop.f32.mrf.mxu0
        %1206 = vdwg.mxu0
        %v1207 = vmax.f32 %v1199, 0.0
        %v1208 = vmax.f32 %v1204, 0.0
        %v1209 = vsel %vm1053, %v1207, 0.0
        %v1210 = vsel %vm1054, %v1208, 0.0
        %1211 = vst.msk [vmem:[#allocation2 + $0x2] sm:$0xff] %vm523, %v1209
        %1212 = vst.msk [vmem:[#allocation2 + $0xa] sm:$0xff] %vm523, %v1210
        %v1213 = vld [vmem:[#allocation2] sm:$0xff]
        %v1214 = vld [vmem:[#allocation2 + $0x8] sm:$0xff]
        %v1215 = vld [vmem:[#allocation2 + $0x1] sm:$0xff]
        %v1216 = vld [vmem:[#allocation2 + $0x9] sm:$0xff]
        %v1217 = vld [vmem:[#allocation2 + $0x2] sm:$0xff]
        %v1218 = vld [vmem:[#allocation2 + $0xa] sm:$0xff]
        %v1219 = vld [vmem:[#allocation2 + $0x3] sm:$0xff]
        %v1220 = vld [vmem:[#allocation2 + $0xb] sm:$0xff]
        %v1221 = vld [vmem:[#allocation2 + $0x4] sm:$0xff]
        %v1222 = vld [vmem:[#allocation2 + $0xc] sm:$0xff]
        %1225 = vrot.lane.b32.xlu0 %v1215, 32
        %v1226 = vpop.permute.xlu0 %1225
        %1227 = vrot.lane.b32.xlu0 %v1216, 32
        %v1228 = vpop.permute.xlu0 %1227
        %1233 = vrot.lane.b32.xlu0 %v1217, 64
        %v1234 = vpop.permute.xlu0 %1233
        %1235 = vrot.lane.b32.xlu0 %v1218, 64
        %v1236 = vpop.permute.xlu0 %1235
        %1241 = vrot.lane.b32.xlu0 %v1219, 96
        %v1242 = vpop.permute.xlu0 %1241
        %1243 = vrot.lane.b32.xlu0 %v1220, 96
        %v1244 = vpop.permute.xlu0 %1243
        %v1247 = vsel %vm523, %v1213, %v1226
        %v1248 = vsel %vm523, %v1214, %v1228
        %v1249 = vsel %vm1098, %v1247, %v1234
        %v1250 = vsel %vm1098, %v1248, %v1236
        %v1251 = vsel %vm1101, %v1249, %v1242
        %v1252 = vsel %vm1101, %v1250, %v1244
        %s1253 = scalar_lea.vmem %s7, 160
        %v1254 = vld [vmem:[%s1253] sm:$0xff]
        %v1255 = vld [vmem:[%s1253 + $0x8] sm:$0xff]
        %v1256 = vld [vmem:[%s1253 + $0x10] sm:$0xff]
        %v1257 = vld [vmem:[%s1253 + $0x18] sm:$0xff]
        %v1258 = vld [vmem:[%s1253 + $0x20] sm:$0xff]
        %v1259 = vld [vmem:[%s1253 + $0x28] sm:$0xff]
        %v1260 = vld [vmem:[%s1253 + $0x30] sm:$0xff]
        %v1261 = vld [vmem:[%s1253 + $0x38] sm:$0xff]
        %v1262 = vld [vmem:[%s1253 + $0x40] sm:$0xff]
        %v1263 = vld [vmem:[%s1253 + $0x48] sm:$0xff]
        %v1264 = vld [vmem:[%s1253 + $0x50] sm:$0xff]
        %v1265 = vld [vmem:[%s1253 + $0x58] sm:$0xff]
        %v1266 = vld [vmem:[%s1253 + $0x60] sm:$0xff]
        %v1267 = vld [vmem:[%s1253 + $0x68] sm:$0xff]
        %v1268 = vld [vmem:[%s1253 + $0x70] sm:$0xff]
        %v1269 = vld [vmem:[%s1253 + $0x78] sm:$0xff]
        %v1270 = vld [vmem:[%s1253 + $0x80] sm:$0xff]
        %v1271 = vld [vmem:[%s1253 + $0x88] sm:$0xff]
        %v1272 = vld [vmem:[%s1253 + $0x90] sm:$0xff]
        %v1273 = vld [vmem:[%s1253 + $0x98] sm:$0xff]
        %s1274 = sld [smem:[#allocation7 + $0x1]]
        %v1275 = vstv %s1274
        %v1277 = vsel %vm523, %v1221, 0
        %v1280 = vsel %vm523, %v1222, 0
        %1282 = vmatprep.subr.mxu0 0.0
        %1283 = vmatpush1.msra.mxu0 %v1269
        %1284 = vmatprep.subr.mxu0 0.0
        %1285 = vmatpush1.msra.mxu0 %v1268
        %1286 = vmatprep.subr.mxu0 0.0
        %1287 = vmatpush1.msra.mxu0 %v1267
        %1288 = vmatprep.subr.mxu0 0.0
        %1289 = vmatpush1.msra.mxu0 %v1266
        %1290 = vmatprep.subr.mxu0 0.0
        %1291 = vmatpush1.msra.mxu0 %v1265
        %1292 = vmatprep.subr.mxu0 0.0
        %1293 = vmatpush1.msra.mxu0 %v1264
        %1294 = vmatprep.subr.mxu0 0.0
        %1295 = vmatpush1.msra.mxu0 %v1263
        %1296 = vmatprep.subr.mxu0 0.0
        %1297 = vmatpush1.msra.mxu0 %v1262
        %1298 = vmatprep.subr.mxu0 0.0
        %1299 = vmatpush1.msra.mxu0 %v1261
        %1300 = vmatprep.subr.mxu0 0.0
        %1301 = vmatpush1.msra.mxu0 %v1260
        %1302 = vmatprep.subr.mxu0 0.0
        %1303 = vmatpush1.msra.mxu0 %v1259
        %1304 = vmatprep.subr.mxu0 0.0
        %1305 = vmatpush1.msra.mxu0 %v1258
        %1306 = vmatprep.subr.mxu0 0.0
        %1307 = vmatpush1.msra.mxu0 %v1257
        %1308 = vmatprep.subr.mxu0 0.0
        %1309 = vmatpush1.msra.mxu0 %v1256
        %1310 = vmatprep.subr.mxu0 0.0
        %1311 = vmatpush1.msra.mxu0 %v1255
        %1312 = vmatprep.subr.mxu0 0.0
        %1313 = vmatpush1.msra.mxu0 %v1254
        %1314 = vmatprep.subr.mxu0 0.0
        %1315 = vmatpush2.msra.mxu0 0.0
        %1316 = vmatprep.subr.mxu0 0.0
        %1317 = vmatpush2.msra.mxu0 0.0
        %1318 = vmatprep.subr.mxu0 0.0
        %1319 = vmatpush2.msra.mxu0 0.0
        %1320 = vmatprep.subr.mxu0 0.0
        %1321 = vmatpush2.msra.mxu0 0.0
        %1322 = vmatprep.subr.mxu0 0.0
        %1323 = vmatpush2.msra.mxu0 0.0
        %1324 = vmatprep.subr.mxu0 0.0
        %1325 = vmatpush2.msra.mxu0 0.0
        %1326 = vmatprep.subr.mxu0 0.0
        %1327 = vmatpush2.msra.mxu0 0.0
        %1328 = vmatprep.subr.mxu0 0.0
        %1329 = vmatpush2.msra.mxu0 0.0
        %1330 = vmatprep.subr.mxu0 0.0
        %1331 = vmatpush2.msra.mxu0 0.0
        %1332 = vmatprep.subr.mxu0 0.0
        %1333 = vmatpush2.msra.mxu0 0.0
        %1334 = vmatprep.subr.mxu0 0.0
        %1335 = vmatpush2.msra.mxu0 0.0
        %1336 = vmatprep.subr.mxu0 0.0
        %1337 = vmatpush2.msra.mxu0 0.0
        %1338 = vmatprep.subr.mxu0 0.0
        %1339 = vmatpush2.msra.mxu0 %v1273
        %1340 = vmatprep.subr.mxu0 0.0
        %1341 = vmatpush2.msra.mxu0 %v1272
        %1342 = vmatprep.subr.mxu0 0.0
        %1343 = vmatpush2.msra.mxu0 %v1271
        %1344 = vmatprep.subr.mxu0 0.0
        %1345 = vmatpush2.msra.mxu0 %v1270
        %1346 = vmatprep.mubr.f32.mxu0 %v1277
        %1347 = vmatmul.mubr.f32.gmra.mxu0 %v1251
        %v1348 = vpop.f32.mrf.mxu0
        %v1349 = vadd.f32 %v1275, %v1348
        %v1350 = vpop.f32.mrf.mxu0
        %1351 = vmatprep.mubr.f32.mxu0 %v1280
        %1352 = vmatmul.mubr.f32.gmra.mxu0 %v1252
        %v1353 = vpop.f32.mrf.mxu0
        %v1354 = vadd.f32 %v1275, %v1353
        %v1355 = vpop.f32.mrf.mxu0
        %1356 = vdwg.mxu0
        %v1357 = vmax.f32 %v1349, 0.0
        %v1358 = vmax.f32 %v1354, 0.0
        %v1359 = vsel %vm1053, %v1357, 0.0
        %v1360 = vsel %vm1054, %v1358, 0.0
        %1361 = vst.msk [vmem:[#allocation2 + $0x2] sm:$0xff] %vm523, %v1359
        %1362 = vst.msk [vmem:[#allocation2 + $0xa] sm:$0xff] %vm523, %v1360
        %v1363 = vld [vmem:[#allocation2] sm:$0xff]
        %v1364 = vld [vmem:[#allocation2 + $0x8] sm:$0xff]
        %v1365 = vld [vmem:[#allocation2 + $0x1] sm:$0xff]
        %v1366 = vld [vmem:[#allocation2 + $0x9] sm:$0xff]
        %v1367 = vld [vmem:[#allocation2 + $0x2] sm:$0xff]
        %v1368 = vld [vmem:[#allocation2 + $0xa] sm:$0xff]
        %v1369 = vld [vmem:[#allocation2 + $0x3] sm:$0xff]
        %v1370 = vld [vmem:[#allocation2 + $0xb] sm:$0xff]
        %v1371 = vld [vmem:[#allocation2 + $0x4] sm:$0xff]
        %v1372 = vld [vmem:[#allocation2 + $0xc] sm:$0xff]
        %1375 = vrot.lane.b32.xlu0 %v1365, 32
        %v1376 = vpop.permute.xlu0 %1375
        %1377 = vrot.lane.b32.xlu0 %v1366, 32
        %v1378 = vpop.permute.xlu0 %1377
        %1383 = vrot.lane.b32.xlu0 %v1367, 64
        %v1384 = vpop.permute.xlu0 %1383
        %1385 = vrot.lane.b32.xlu0 %v1368, 64
        %v1386 = vpop.permute.xlu0 %1385
        %1391 = vrot.lane.b32.xlu0 %v1369, 96
        %v1392 = vpop.permute.xlu0 %1391
        %1393 = vrot.lane.b32.xlu0 %v1370, 96
        %v1394 = vpop.permute.xlu0 %1393
        %v1397 = vsel %vm523, %v1363, %v1376
        %v1398 = vsel %vm523, %v1364, %v1378
        %v1399 = vsel %vm1098, %v1397, %v1384
        %v1400 = vsel %vm1098, %v1398, %v1386
        %v1401 = vsel %vm1101, %v1399, %v1392
        %v1402 = vsel %vm1101, %v1400, %v1394
        %s1403 = scalar_lea.vmem %s7, 320
        %v1404 = vld [vmem:[%s1403] sm:$0xff]
        %v1405 = vld [vmem:[%s1403 + $0x8] sm:$0xff]
        %v1406 = vld [vmem:[%s1403 + $0x10] sm:$0xff]
        %v1407 = vld [vmem:[%s1403 + $0x18] sm:$0xff]
        %v1408 = vld [vmem:[%s1403 + $0x20] sm:$0xff]
        %v1409 = vld [vmem:[%s1403 + $0x28] sm:$0xff]
        %v1410 = vld [vmem:[%s1403 + $0x30] sm:$0xff]
        %v1411 = vld [vmem:[%s1403 + $0x38] sm:$0xff]
        %v1412 = vld [vmem:[%s1403 + $0x40] sm:$0xff]
        %v1413 = vld [vmem:[%s1403 + $0x48] sm:$0xff]
        %v1414 = vld [vmem:[%s1403 + $0x50] sm:$0xff]
        %v1415 = vld [vmem:[%s1403 + $0x58] sm:$0xff]
        %v1416 = vld [vmem:[%s1403 + $0x60] sm:$0xff]
        %v1417 = vld [vmem:[%s1403 + $0x68] sm:$0xff]
        %v1418 = vld [vmem:[%s1403 + $0x70] sm:$0xff]
        %v1419 = vld [vmem:[%s1403 + $0x78] sm:$0xff]
        %v1420 = vld [vmem:[%s1403 + $0x80] sm:$0xff]
        %v1421 = vld [vmem:[%s1403 + $0x88] sm:$0xff]
        %v1422 = vld [vmem:[%s1403 + $0x90] sm:$0xff]
        %v1423 = vld [vmem:[%s1403 + $0x98] sm:$0xff]
        %s1424 = sld [smem:[#allocation7 + $0x2]]
        %v1425 = vstv %s1424
        %v1427 = vsel %vm523, %v1371, 0
        %v1430 = vsel %vm523, %v1372, 0
        %1432 = vmatprep.subr.mxu0 0.0
        %1433 = vmatpush1.msra.mxu0 %v1419
        %1434 = vmatprep.subr.mxu0 0.0
        %1435 = vmatpush1.msra.mxu0 %v1418
        %1436 = vmatprep.subr.mxu0 0.0
        %1437 = vmatpush1.msra.mxu0 %v1417
        %1438 = vmatprep.subr.mxu0 0.0
        %1439 = vmatpush1.msra.mxu0 %v1416
        %1440 = vmatprep.subr.mxu0 0.0
        %1441 = vmatpush1.msra.mxu0 %v1415
        %1442 = vmatprep.subr.mxu0 0.0
        %1443 = vmatpush1.msra.mxu0 %v1414
        %1444 = vmatprep.subr.mxu0 0.0
        %1445 = vmatpush1.msra.mxu0 %v1413
        %1446 = vmatprep.subr.mxu0 0.0
        %1447 = vmatpush1.msra.mxu0 %v1412
        %1448 = vmatprep.subr.mxu0 0.0
        %1449 = vmatpush1.msra.mxu0 %v1411
        %1450 = vmatprep.subr.mxu0 0.0
        %1451 = vmatpush1.msra.mxu0 %v1410
        %1452 = vmatprep.subr.mxu0 0.0
        %1453 = vmatpush1.msra.mxu0 %v1409
        %1454 = vmatprep.subr.mxu0 0.0
        %1455 = vmatpush1.msra.mxu0 %v1408
        %1456 = vmatprep.subr.mxu0 0.0
        %1457 = vmatpush1.msra.mxu0 %v1407
        %1458 = vmatprep.subr.mxu0 0.0
        %1459 = vmatpush1.msra.mxu0 %v1406
        %1460 = vmatprep.subr.mxu0 0.0
        %1461 = vmatpush1.msra.mxu0 %v1405
        %1462 = vmatprep.subr.mxu0 0.0
        %1463 = vmatpush1.msra.mxu0 %v1404
        %1464 = vmatprep.subr.mxu0 0.0
        %1465 = vmatpush2.msra.mxu0 0.0
        %1466 = vmatprep.subr.mxu0 0.0
        %1467 = vmatpush2.msra.mxu0 0.0
        %1468 = vmatprep.subr.mxu0 0.0
        %1469 = vmatpush2.msra.mxu0 0.0
        %1470 = vmatprep.subr.mxu0 0.0
        %1471 = vmatpush2.msra.mxu0 0.0
        %1472 = vmatprep.subr.mxu0 0.0
        %1473 = vmatpush2.msra.mxu0 0.0
        %1474 = vmatprep.subr.mxu0 0.0
        %1475 = vmatpush2.msra.mxu0 0.0
        %1476 = vmatprep.subr.mxu0 0.0
        %1477 = vmatpush2.msra.mxu0 0.0
        %1478 = vmatprep.subr.mxu0 0.0
        %1479 = vmatpush2.msra.mxu0 0.0
        %1480 = vmatprep.subr.mxu0 0.0
        %1481 = vmatpush2.msra.mxu0 0.0
        %1482 = vmatprep.subr.mxu0 0.0
        %1483 = vmatpush2.msra.mxu0 0.0
        %1484 = vmatprep.subr.mxu0 0.0
        %1485 = vmatpush2.msra.mxu0 0.0
        %1486 = vmatprep.subr.mxu0 0.0
        %1487 = vmatpush2.msra.mxu0 0.0
        %1488 = vmatprep.subr.mxu0 0.0
        %1489 = vmatpush2.msra.mxu0 %v1423
        %1490 = vmatprep.subr.mxu0 0.0
        %1491 = vmatpush2.msra.mxu0 %v1422
        %1492 = vmatprep.subr.mxu0 0.0
        %1493 = vmatpush2.msra.mxu0 %v1421
        %1494 = vmatprep.subr.mxu0 0.0
        %1495 = vmatpush2.msra.mxu0 %v1420
        %1496 = vmatprep.mubr.f32.mxu0 %v1427
        %1497 = vmatmul.mubr.f32.gmra.mxu0 %v1401
        %v1498 = vpop.f32.mrf.mxu0
        %v1499 = vadd.f32 %v1425, %v1498
        %v1500 = vpop.f32.mrf.mxu0
        %1501 = vmatprep.mubr.f32.mxu0 %v1430
        %1502 = vmatmul.mubr.f32.gmra.mxu0 %v1402
        %v1503 = vpop.f32.mrf.mxu0
        %v1504 = vadd.f32 %v1425, %v1503
        %v1505 = vpop.f32.mrf.mxu0
        %1506 = vdwg.mxu0
        %v1507 = vmax.f32 %v1499, 0.0
        %v1508 = vmax.f32 %v1504, 0.0
        %v1509 = vsel %vm1053, %v1507, 0.0
        %v1510 = vsel %vm1054, %v1508, 0.0
        %v1511 = vld [vmem:[%s9] sm:$0xff]
        %v1512 = vld [vmem:[%s9 + $0x8] sm:$0xff]
        %v1513 = vld [vmem:[%s9 + $0x10] sm:$0xff]
        %v1514 = vld [vmem:[%s9 + $0x18] sm:$0xff]
        %v1515 = vld [vmem:[%s10] sm:$0x1]
        %v1517 = vsel %vm523, %v1048, 0
        %1519 = vmatprep.subr.mxu0 0.0
        %1520 = vmatpush1.msra.mxu0 0.0
        %1521 = vmatprep.subr.mxu0 0.0
        %1522 = vmatpush1.msra.mxu0 0.0
        %1523 = vmatprep.subr.mxu0 0.0
        %1524 = vmatpush1.msra.mxu0 0.0
        %1525 = vmatprep.subr.mxu0 0.0
        %1526 = vmatpush1.msra.mxu0 0.0
        %1527 = vmatprep.subr.mxu0 0.0
        %1528 = vmatpush1.msra.mxu0 0.0
        %1529 = vmatprep.subr.mxu0 0.0
        %1530 = vmatpush1.msra.mxu0 0.0
        %1531 = vmatprep.subr.mxu0 0.0
        %1532 = vmatpush1.msra.mxu0 0.0
        %1533 = vmatprep.subr.mxu0 0.0
        %1534 = vmatpush1.msra.mxu0 0.0
        %1535 = vmatprep.subr.mxu0 0.0
        %1536 = vmatpush1.msra.mxu0 0.0
        %1537 = vmatprep.subr.mxu0 0.0
        %1538 = vmatpush1.msra.mxu0 0.0
        %1539 = vmatprep.subr.mxu0 0.0
        %1540 = vmatpush1.msra.mxu0 0.0
        %1541 = vmatprep.subr.mxu0 0.0
        %1542 = vmatpush1.msra.mxu0 0.0
        %1543 = vmatprep.subr.mxu0 0.0
        %1544 = vmatpush1.msra.mxu0 %v1514
        %1545 = vmatprep.subr.mxu0 0.0
        %1546 = vmatpush1.msra.mxu0 %v1513
        %1547 = vmatprep.subr.mxu0 0.0
        %1548 = vmatpush1.msra.mxu0 %v1512
        %1549 = vmatprep.subr.mxu0 0.0
        %1550 = vmatpush1.msra.mxu0 %v1511
        %1551 = vmatprep.subr.mxu0 0.0
        %1552 = vmatpush2.msra.mxu0 0.0
        %1553 = vmatprep.subr.mxu0 0.0
        %1554 = vmatpush2.msra.mxu0 0.0
        %1555 = vmatprep.subr.mxu0 0.0
        %1556 = vmatpush2.msra.mxu0 0.0
        %1557 = vmatprep.subr.mxu0 0.0
        %1558 = vmatpush2.msra.mxu0 0.0
        %1559 = vmatprep.subr.mxu0 0.0
        %1560 = vmatpush2.msra.mxu0 0.0
        %1561 = vmatprep.subr.mxu0 0.0
        %1562 = vmatpush2.msra.mxu0 0.0
        %1563 = vmatprep.subr.mxu0 0.0
        %1564 = vmatpush2.msra.mxu0 0.0
        %1565 = vmatprep.subr.mxu0 0.0
        %1566 = vmatpush2.msra.mxu0 0.0
        %1567 = vmatprep.subr.mxu0 0.0
        %1568 = vmatpush2.msra.mxu0 0.0
        %1569 = vmatprep.subr.mxu0 0.0
        %1570 = vmatpush2.msra.mxu0 0.0
        %1571 = vmatprep.subr.mxu0 0.0
        %1572 = vmatpush2.msra.mxu0 0.0
        %1573 = vmatprep.subr.mxu0 0.0
        %1574 = vmatpush2.msra.mxu0 0.0
        %1575 = vmatprep.subr.mxu0 0.0
        %1576 = vmatpush2.msra.mxu0 0.0
        %1577 = vmatprep.subr.mxu0 0.0
        %1578 = vmatpush2.msra.mxu0 0.0
        %1579 = vmatprep.subr.mxu0 0.0
        %1580 = vmatpush2.msra.mxu0 0.0
        %1581 = vmatprep.subr.mxu0 0.0
        %1582 = vmatpush2.msra.mxu0 0.0
        %1583 = vmatprep.mubr.f32.mxu0 0.0
        %1584 = vmatmul.mubr.f32.gmra.mxu0 %v1517
        %v1585 = vpop.f32.mrf.mxu0
        %v1586 = vadd.f32 %v1515, %v1585
        %v1587 = vpop.f32.mrf.mxu0
        %1588 = vdwg.mxu0
        %v1589 = vmax.f32 %v1586, 0.0
        %v1591 = vlaneseq
        %v1592 = vshrl.u32 %v1591, 7
        %v1593 = vsub.s32 0, %v1592
        %v1594 = vrot.slane %v1515, %v1593
        %v1597 = vsel %vm523, %v1509, 0
        %v1600 = vsel %vm523, %v1510, 0
        %1602 = vmatprep.subr.mxu0 0.0
        %1603 = vmatpush1.msra.mxu0 0.0
        %1604 = vmatprep.subr.mxu0 0.0
        %1605 = vmatpush1.msra.mxu0 0.0
        %1606 = vmatprep.subr.mxu0 0.0
        %1607 = vmatpush1.msra.mxu0 0.0
        %1608 = vmatprep.subr.mxu0 0.0
        %1609 = vmatpush1.msra.mxu0 0.0
        %1610 = vmatprep.subr.mxu0 0.0
        %1611 = vmatpush1.msra.mxu0 0.0
        %1612 = vmatprep.subr.mxu0 0.0
        %1613 = vmatpush1.msra.mxu0 0.0
        %1614 = vmatprep.subr.mxu0 0.0
        %1615 = vmatpush1.msra.mxu0 0.0
        %1616 = vmatprep.subr.mxu0 0.0
        %1617 = vmatpush1.msra.mxu0 0.0
        %1618 = vmatprep.subr.mxu0 0.0
        %1619 = vmatpush1.msra.mxu0 0.0
        %1620 = vmatprep.subr.mxu0 0.0
        %1621 = vmatpush1.msra.mxu0 0.0
        %1622 = vmatprep.subr.mxu0 0.0
        %1623 = vmatpush1.msra.mxu0 0.0
        %1624 = vmatprep.subr.mxu0 0.0
        %1625 = vmatpush1.msra.mxu0 0.0
        %1626 = vmatprep.subr.mxu0 0.0
        %1627 = vmatpush1.msra.mxu0 %v1514
        %1628 = vmatprep.subr.mxu0 0.0
        %1629 = vmatpush1.msra.mxu0 %v1513
        %1630 = vmatprep.subr.mxu0 0.0
        %1631 = vmatpush1.msra.mxu0 %v1512
        %1632 = vmatprep.subr.mxu0 0.0
        %1633 = vmatpush1.msra.mxu0 %v1511
        %1634 = vmatprep.subr.mxu0 0.0
        %1635 = vmatpush2.msra.mxu0 0.0
        %1636 = vmatprep.subr.mxu0 0.0
        %1637 = vmatpush2.msra.mxu0 0.0
        %1638 = vmatprep.subr.mxu0 0.0
        %1639 = vmatpush2.msra.mxu0 0.0
        %1640 = vmatprep.subr.mxu0 0.0
        %1641 = vmatpush2.msra.mxu0 0.0
        %1642 = vmatprep.subr.mxu0 0.0
        %1643 = vmatpush2.msra.mxu0 0.0
        %1644 = vmatprep.subr.mxu0 0.0
        %1645 = vmatpush2.msra.mxu0 0.0
        %1646 = vmatprep.subr.mxu0 0.0
        %1647 = vmatpush2.msra.mxu0 0.0
        %1648 = vmatprep.subr.mxu0 0.0
        %1649 = vmatpush2.msra.mxu0 0.0
        %1650 = vmatprep.subr.mxu0 0.0
        %1651 = vmatpush2.msra.mxu0 0.0
        %1652 = vmatprep.subr.mxu0 0.0
        %1653 = vmatpush2.msra.mxu0 0.0
        %1654 = vmatprep.subr.mxu0 0.0
        %1655 = vmatpush2.msra.mxu0 0.0
        %1656 = vmatprep.subr.mxu0 0.0
        %1657 = vmatpush2.msra.mxu0 0.0
        %1658 = vmatprep.subr.mxu0 0.0
        %1659 = vmatpush2.msra.mxu0 0.0
        %1660 = vmatprep.subr.mxu0 0.0
        %1661 = vmatpush2.msra.mxu0 0.0
        %1662 = vmatprep.subr.mxu0 0.0
        %1663 = vmatpush2.msra.mxu0 0.0
        %1664 = vmatprep.subr.mxu0 0.0
        %1665 = vmatpush2.msra.mxu0 0.0
        %1666 = vmatprep.mubr.f32.mxu0 0.0
        %1667 = vmatmul.mubr.f32.gmra.mxu0 %v1597
        %v1668 = vpop.f32.mrf.mxu0
        %v1669 = vadd.f32 %v1594, %v1668
        %v1670 = vpop.f32.mrf.mxu0
        %1671 = vmatprep.mubr.f32.mxu0 0.0
        %1672 = vmatmul.mubr.f32.gmra.mxu0 %v1600
        %v1673 = vpop.f32.mrf.mxu0
        %v1674 = vadd.f32 %v1594, %v1673
        %v1675 = vpop.f32.mrf.mxu0
        %1676 = vdwg.mxu0
        %v1677 = vmax.f32 %v1669, 0.0
        %v1678 = vmax.f32 %v1674, 0.0
        %v1679 = vlaneseq
        %v1680 = vshrl.u32 %v1679, 7
        %v1681 = vsub.s32 0, %v1680
        %v1682 = vrot.slane %v1589, %v1681
        %v1683 = vmul.f32 %v1677, %v1682
        %v1684 = vmul.f32 %v1678, %v1682
        %v1685 = vsel %vm523, %v1683, 0.0
        %1686 = vadd.xlane.f32.xlu0 %v1685
        %v1687 = vpop.xlane.xlu0 %1686
        %v1688 = vsel %vm523, %v1684, 0.0
        %1689 = vadd.xlane.f32.xlu0 %v1688
        %v1690 = vpop.xlane.xlu0 %1689
        %v1691 = vtanh.pop %v1687
        %v1692 = vtanh.pop %v1690
        %v1693 = vmul.f32 %v1691, %v1677
        %v1694 = vmul.f32 %v1692, %v1678
        %v1695 = vsel %vm1053, %v1693, 0.0
        %v1696 = vsel %vm1054, %v1694, 0.0
        %v1697 = vsel %vm523, %v1695, 0.0
        %v1698 = vsel %vm523, %v1696, 0.0
        %v1699 = vadd.f32 %v1697, %v1698
        %v1700 = vrot.slane %v1699, 4
        %v1701 = vadd.f32 %v1699, %v1700
        %v1702 = vrot.slane %v1701, 2
        %v1703 = vadd.f32 %v1701, %v1702
        %v1704 = vrot.slane %v1703, 1
        %v1705 = vadd.f32 %v1703, %v1704
        %v1706 = vstv %s507
        %v1707 = vrcp.pop %v1706
        %v1708 = vmul.f32 %v1705, %v1707
        %v1709 = vld [vmem:[%s11] sm:$0xff]
        %v1710 = vld [vmem:[%s11 + $0x8] sm:$0xff]
        %v1711 = vld [vmem:[%s11 + $0x10] sm:$0xff]
        %v1712 = vld [vmem:[%s11 + $0x18] sm:$0xff]
        %v1713 = vld [vmem:[%s11 + $0x20] sm:$0xff]
        %v1714 = vld [vmem:[%s11 + $0x28] sm:$0xff]
        %v1715 = vld [vmem:[%s11 + $0x30] sm:$0xff]
        %v1716 = vld [vmem:[%s11 + $0x38] sm:$0xff]
        %v1718 = vsel %vm523, %v1708, 0
        %1720 = vmatprep.subr.mxu0 0.0
        %1721 = vmatpush1.msra.mxu0 0.0
        %1722 = vmatprep.subr.mxu0 0.0
        %1723 = vmatpush1.msra.mxu0 0.0
        %1724 = vmatprep.subr.mxu0 0.0
        %1725 = vmatpush1.msra.mxu0 0.0
        %1726 = vmatprep.subr.mxu0 0.0
        %1727 = vmatpush1.msra.mxu0 0.0
        %1728 = vmatprep.subr.mxu0 0.0
        %1729 = vmatpush1.msra.mxu0 0.0
        %1730 = vmatprep.subr.mxu0 0.0
        %1731 = vmatpush1.msra.mxu0 0.0
        %1732 = vmatprep.subr.mxu0 0.0
        %1733 = vmatpush1.msra.mxu0 0.0
        %1734 = vmatprep.subr.mxu0 0.0
        %1735 = vmatpush1.msra.mxu0 0.0
        %1736 = vmatprep.subr.mxu0 0.0
        %1737 = vmatpush1.msra.mxu0 0.0
        %1738 = vmatprep.subr.mxu0 0.0
        %1739 = vmatpush1.msra.mxu0 0.0
        %1740 = vmatprep.subr.mxu0 0.0
        %1741 = vmatpush1.msra.mxu0 0.0
        %1742 = vmatprep.subr.mxu0 0.0
        %1743 = vmatpush1.msra.mxu0 0.0
        %1744 = vmatprep.subr.mxu0 0.0
        %1745 = vmatpush1.msra.mxu0 %v1716
        %1746 = vmatprep.subr.mxu0 0.0
        %1747 = vmatpush1.msra.mxu0 %v1715
        %1748 = vmatprep.subr.mxu0 0.0
        %1749 = vmatpush1.msra.mxu0 %v1714
        %1750 = vmatprep.subr.mxu0 0.0
        %1751 = vmatpush1.msra.mxu0 %v1713
        %1752 = vmatprep.subr.mxu0 0.0
        %1753 = vmatpush2.msra.mxu0 0.0
        %1754 = vmatprep.subr.mxu0 0.0
        %1755 = vmatpush2.msra.mxu0 0.0
        %1756 = vmatprep.subr.mxu0 0.0
        %1757 = vmatpush2.msra.mxu0 0.0
        %1758 = vmatprep.subr.mxu0 0.0
        %1759 = vmatpush2.msra.mxu0 0.0
        %1760 = vmatprep.subr.mxu0 0.0
        %1761 = vmatpush2.msra.mxu0 0.0
        %1762 = vmatprep.subr.mxu0 0.0
        %1763 = vmatpush2.msra.mxu0 0.0
        %1764 = vmatprep.subr.mxu0 0.0
        %1765 = vmatpush2.msra.mxu0 0.0
        %1766 = vmatprep.subr.mxu0 0.0
        %1767 = vmatpush2.msra.mxu0 0.0
        %1768 = vmatprep.subr.mxu0 0.0
        %1769 = vmatpush2.msra.mxu0 0.0
        %1770 = vmatprep.subr.mxu0 0.0
        %1771 = vmatpush2.msra.mxu0 0.0
        %1772 = vmatprep.subr.mxu0 0.0
        %1773 = vmatpush2.msra.mxu0 0.0
        %1774 = vmatprep.subr.mxu0 0.0
        %1775 = vmatpush2.msra.mxu0 0.0
        %1776 = vmatprep.subr.mxu0 0.0
        %1777 = vmatpush2.msra.mxu0 0.0
        %1778 = vmatprep.subr.mxu0 0.0
        %1779 = vmatpush2.msra.mxu0 0.0
        %1780 = vmatprep.subr.mxu0 0.0
        %1781 = vmatpush2.msra.mxu0 0.0
        %1782 = vmatprep.subr.mxu0 0.0
        %1783 = vmatpush2.msra.mxu0 0.0
        %1784 = vmatprep.mubr.f32.mxu0 0.0
        %1785 = vmatmul.mubr.f32.gmra.mxu0 %v1718
        %v1786 = vpop.f32.mrf.mxu0
        %v1787 = vadd.f32 0.0, %v1786
        %v1788 = vpop.f32.mrf.mxu0
        %1789 = vdwg.mxu0
        %1790 = vmatprep.subr.mxu0 0.0
        %1791 = vmatpush1.msra.mxu0 0.0
        %1792 = vmatprep.subr.mxu0 0.0
        %1793 = vmatpush1.msra.mxu0 0.0
        %1794 = vmatprep.subr.mxu0 0.0
        %1795 = vmatpush1.msra.mxu0 0.0
        %1796 = vmatprep.subr.mxu0 0.0
        %1797 = vmatpush1.msra.mxu0 0.0
        %1798 = vmatprep.subr.mxu0 0.0
        %1799 = vmatpush1.msra.mxu0 0.0
        %1800 = vmatprep.subr.mxu0 0.0
        %1801 = vmatpush1.msra.mxu0 0.0
        %1802 = vmatprep.subr.mxu0 0.0
        %1803 = vmatpush1.msra.mxu0 0.0
        %1804 = vmatprep.subr.mxu0 0.0
        %1805 = vmatpush1.msra.mxu0 0.0
        %1806 = vmatprep.subr.mxu0 0.0
        %1807 = vmatpush1.msra.mxu0 0.0
        %1808 = vmatprep.subr.mxu0 0.0
        %1809 = vmatpush1.msra.mxu0 0.0
        %1810 = vmatprep.subr.mxu0 0.0
        %1811 = vmatpush1.msra.mxu0 0.0
        %1812 = vmatprep.subr.mxu0 0.0
        %1813 = vmatpush1.msra.mxu0 0.0
        %1814 = vmatprep.subr.mxu0 0.0
        %1815 = vmatpush1.msra.mxu0 %v1712
        %1816 = vmatprep.subr.mxu0 0.0
        %1817 = vmatpush1.msra.mxu0 %v1711
        %1818 = vmatprep.subr.mxu0 0.0
        %1819 = vmatpush1.msra.mxu0 %v1710
        %1820 = vmatprep.subr.mxu0 0.0
        %1821 = vmatpush1.msra.mxu0 %v1709
        %1822 = vmatprep.subr.mxu0 0.0
        %1823 = vmatpush2.msra.mxu0 0.0
        %1824 = vmatprep.subr.mxu0 0.0
        %1825 = vmatpush2.msra.mxu0 0.0
        %1826 = vmatprep.subr.mxu0 0.0
        %1827 = vmatpush2.msra.mxu0 0.0
        %1828 = vmatprep.subr.mxu0 0.0
        %1829 = vmatpush2.msra.mxu0 0.0
        %1830 = vmatprep.subr.mxu0 0.0
        %1831 = vmatpush2.msra.mxu0 0.0
        %1832 = vmatprep.subr.mxu0 0.0
        %1833 = vmatpush2.msra.mxu0 0.0
        %1834 = vmatprep.subr.mxu0 0.0
        %1835 = vmatpush2.msra.mxu0 0.0
        %1836 = vmatprep.subr.mxu0 0.0
        %1837 = vmatpush2.msra.mxu0 0.0
        %1838 = vmatprep.subr.mxu0 0.0
        %1839 = vmatpush2.msra.mxu0 0.0
        %1840 = vmatprep.subr.mxu0 0.0
        %1841 = vmatpush2.msra.mxu0 0.0
        %1842 = vmatprep.subr.mxu0 0.0
        %1843 = vmatpush2.msra.mxu0 0.0
        %1844 = vmatprep.subr.mxu0 0.0
        %1845 = vmatpush2.msra.mxu0 0.0
        %1846 = vmatprep.subr.mxu0 0.0
        %1847 = vmatpush2.msra.mxu0 0.0
        %1848 = vmatprep.subr.mxu0 0.0
        %1849 = vmatpush2.msra.mxu0 0.0
        %1850 = vmatprep.subr.mxu0 0.0
        %1851 = vmatpush2.msra.mxu0 0.0
        %1852 = vmatprep.subr.mxu0 0.0
        %1853 = vmatpush2.msra.mxu0 0.0
        %1854 = vmatprep.mubr.f32.mxu0 0.0
        %1855 = vmatmul.mubr.f32.gmra.mxu0 %v1517
        %v1856 = vpop.f32.mrf.mxu0
        %v1857 = vadd.f32 %v1787, %v1856
        %v1858 = vpop.f32.mrf.mxu0
        %1859 = vdwg.mxu0
        %v1860 = vld [vmem:[%s12] sm:$0x1]
        %v1861 = vadd.f32 %v1857, %v1860
        %v1862 = vmax.f32 %v1861, 0.0
        %s1863 = scalar_lea.vmem %s11, 64
        %v1864 = vld [vmem:[%s1863] sm:$0xff]
        %v1865 = vld [vmem:[%s1863 + $0x8] sm:$0xff]
        %v1866 = vld [vmem:[%s1863 + $0x10] sm:$0xff]
        %v1867 = vld [vmem:[%s1863 + $0x18] sm:$0xff]
        %v1868 = vld [vmem:[%s1863 + $0x20] sm:$0xff]
        %v1869 = vld [vmem:[%s1863 + $0x28] sm:$0xff]
        %v1870 = vld [vmem:[%s1863 + $0x30] sm:$0xff]
        %v1871 = vld [vmem:[%s1863 + $0x38] sm:$0xff]
        %s1872 = scalar_lea.vmem %s12, 1
        %v1873 = vld [vmem:[%s1872] sm:$0x1]
        %v1875 = vsel %vm1098, %v1862, 0
        %1877 = vmatprep.subr.mxu0 0.0
        %1878 = vmatpush1.msra.mxu0 0.0
        %1879 = vmatprep.subr.mxu0 0.0
        %1880 = vmatpush1.msra.mxu0 0.0
        %1881 = vmatprep.subr.mxu0 0.0
        %1882 = vmatpush1.msra.mxu0 0.0
        %1883 = vmatprep.subr.mxu0 0.0
        %1884 = vmatpush1.msra.mxu0 0.0
        %1885 = vmatprep.subr.mxu0 0.0
        %1886 = vmatpush1.msra.mxu0 0.0
        %1887 = vmatprep.subr.mxu0 0.0
        %1888 = vmatpush1.msra.mxu0 0.0
        %1889 = vmatprep.subr.mxu0 0.0
        %1890 = vmatpush1.msra.mxu0 0.0
        %1891 = vmatprep.subr.mxu0 0.0
        %1892 = vmatpush1.msra.mxu0 0.0
        %1893 = vmatprep.subr.mxu0 0.0
        %1894 = vmatpush1.msra.mxu0 %v1871
        %1895 = vmatprep.subr.mxu0 0.0
        %1896 = vmatpush1.msra.mxu0 %v1870
        %1897 = vmatprep.subr.mxu0 0.0
        %1898 = vmatpush1.msra.mxu0 %v1869
        %1899 = vmatprep.subr.mxu0 0.0
        %1900 = vmatpush1.msra.mxu0 %v1868
        %1901 = vmatprep.subr.mxu0 0.0
        %1902 = vmatpush1.msra.mxu0 %v1867
        %1903 = vmatprep.subr.mxu0 0.0
        %1904 = vmatpush1.msra.mxu0 %v1866
        %1905 = vmatprep.subr.mxu0 0.0
        %1906 = vmatpush1.msra.mxu0 %v1865
        %1907 = vmatprep.subr.mxu0 0.0
        %1908 = vmatpush1.msra.mxu0 %v1864
        %1909 = vmatprep.subr.mxu0 0.0
        %1910 = vmatpush2.msra.mxu0 0.0
        %1911 = vmatprep.subr.mxu0 0.0
        %1912 = vmatpush2.msra.mxu0 0.0
        %1913 = vmatprep.subr.mxu0 0.0
        %1914 = vmatpush2.msra.mxu0 0.0
        %1915 = vmatprep.subr.mxu0 0.0
        %1916 = vmatpush2.msra.mxu0 0.0
        %1917 = vmatprep.subr.mxu0 0.0
        %1918 = vmatpush2.msra.mxu0 0.0
        %1919 = vmatprep.subr.mxu0 0.0
        %1920 = vmatpush2.msra.mxu0 0.0
        %1921 = vmatprep.subr.mxu0 0.0
        %1922 = vmatpush2.msra.mxu0 0.0
        %1923 = vmatprep.subr.mxu0 0.0
        %1924 = vmatpush2.msra.mxu0 0.0
        %1925 = vmatprep.subr.mxu0 0.0
        %1926 = vmatpush2.msra.mxu0 0.0
        %1927 = vmatprep.subr.mxu0 0.0
        %1928 = vmatpush2.msra.mxu0 0.0
        %1929 = vmatprep.subr.mxu0 0.0
        %1930 = vmatpush2.msra.mxu0 0.0
        %1931 = vmatprep.subr.mxu0 0.0
        %1932 = vmatpush2.msra.mxu0 0.0
        %1933 = vmatprep.subr.mxu0 0.0
        %1934 = vmatpush2.msra.mxu0 0.0
        %1935 = vmatprep.subr.mxu0 0.0
        %1936 = vmatpush2.msra.mxu0 0.0
        %1937 = vmatprep.subr.mxu0 0.0
        %1938 = vmatpush2.msra.mxu0 0.0
        %1939 = vmatprep.subr.mxu0 0.0
        %1940 = vmatpush2.msra.mxu0 0.0
        %1941 = vmatprep.mubr.f32.mxu0 0.0
        %1942 = vmatmul.mubr.f32.gmra.mxu0 %v1875
        %v1943 = vpop.f32.mrf.mxu0
        %v1944 = vadd.f32 %v1873, %v1943
        %v1945 = vpop.f32.mrf.mxu0
        %1946 = vdwg.mxu0
        %v1947 = vmax.f32 %v1944, 0.0
        %s1948 = scalar_lea.vmem %s11, 128
        %v1949 = vld [vmem:[%s1948] sm:$0xff]
        %v1950 = vld [vmem:[%s1948 + $0x8] sm:$0xff]
        %v1951 = vld [vmem:[%s1948 + $0x10] sm:$0xff]
        %v1952 = vld [vmem:[%s1948 + $0x18] sm:$0xff]
        %v1953 = vld [vmem:[%s1948 + $0x20] sm:$0xff]
        %v1954 = vld [vmem:[%s1948 + $0x28] sm:$0xff]
        %v1955 = vld [vmem:[%s1948 + $0x30] sm:$0xff]
        %v1956 = vld [vmem:[%s1948 + $0x38] sm:$0xff]
        %s1957 = scalar_lea.vmem %s12, 2
        %v1958 = vld [vmem:[%s1957] sm:$0x1]
        %v1960 = vsel %vm1098, %v1947, 0
        %1962 = vmatprep.subr.mxu0 0.0
        %1963 = vmatpush1.msra.mxu0 0.0
        %1964 = vmatprep.subr.mxu0 0.0
        %1965 = vmatpush1.msra.mxu0 0.0
        %1966 = vmatprep.subr.mxu0 0.0
        %1967 = vmatpush1.msra.mxu0 0.0
        %1968 = vmatprep.subr.mxu0 0.0
        %1969 = vmatpush1.msra.mxu0 0.0
        %1970 = vmatprep.subr.mxu0 0.0
        %1971 = vmatpush1.msra.mxu0 0.0
        %1972 = vmatprep.subr.mxu0 0.0
        %1973 = vmatpush1.msra.mxu0 0.0
        %1974 = vmatprep.subr.mxu0 0.0
        %1975 = vmatpush1.msra.mxu0 0.0
        %1976 = vmatprep.subr.mxu0 0.0
        %1977 = vmatpush1.msra.mxu0 0.0
        %1978 = vmatprep.subr.mxu0 0.0
        %1979 = vmatpush1.msra.mxu0 %v1956
        %1980 = vmatprep.subr.mxu0 0.0
        %1981 = vmatpush1.msra.mxu0 %v1955
        %1982 = vmatprep.subr.mxu0 0.0
        %1983 = vmatpush1.msra.mxu0 %v1954
        %1984 = vmatprep.subr.mxu0 0.0
        %1985 = vmatpush1.msra.mxu0 %v1953
        %1986 = vmatprep.subr.mxu0 0.0
        %1987 = vmatpush1.msra.mxu0 %v1952
        %1988 = vmatprep.subr.mxu0 0.0
        %1989 = vmatpush1.msra.mxu0 %v1951
        %1990 = vmatprep.subr.mxu0 0.0
        %1991 = vmatpush1.msra.mxu0 %v1950
        %1992 = vmatprep.subr.mxu0 0.0
        %1993 = vmatpush1.msra.mxu0 %v1949
        %1994 = vmatprep.subr.mxu0 0.0
        %1995 = vmatpush2.msra.mxu0 0.0
        %1996 = vmatprep.subr.mxu0 0.0
        %1997 = vmatpush2.msra.mxu0 0.0
        %1998 = vmatprep.subr.mxu0 0.0
        %1999 = vmatpush2.msra.mxu0 0.0
        %2000 = vmatprep.subr.mxu0 0.0
        %2001 = vmatpush2.msra.mxu0 0.0
        %2002 = vmatprep.subr.mxu0 0.0
        %2003 = vmatpush2.msra.mxu0 0.0
        %2004 = vmatprep.subr.mxu0 0.0
        %2005 = vmatpush2.msra.mxu0 0.0
        %2006 = vmatprep.subr.mxu0 0.0
        %2007 = vmatpush2.msra.mxu0 0.0
        %2008 = vmatprep.subr.mxu0 0.0
        %2009 = vmatpush2.msra.mxu0 0.0
        %2010 = vmatprep.subr.mxu0 0.0
        %2011 = vmatpush2.msra.mxu0 0.0
        %2012 = vmatprep.subr.mxu0 0.0
        %2013 = vmatpush2.msra.mxu0 0.0
        %2014 = vmatprep.subr.mxu0 0.0
        %2015 = vmatpush2.msra.mxu0 0.0
        %2016 = vmatprep.subr.mxu0 0.0
        %2017 = vmatpush2.msra.mxu0 0.0
        %2018 = vmatprep.subr.mxu0 0.0
        %2019 = vmatpush2.msra.mxu0 0.0
        %2020 = vmatprep.subr.mxu0 0.0
        %2021 = vmatpush2.msra.mxu0 0.0
        %2022 = vmatprep.subr.mxu0 0.0
        %2023 = vmatpush2.msra.mxu0 0.0
        %2024 = vmatprep.subr.mxu0 0.0
        %2025 = vmatpush2.msra.mxu0 0.0
        %2026 = vmatprep.mubr.f32.mxu0 0.0
        %2027 = vmatmul.mubr.f32.gmra.mxu0 %v1960
        %v2028 = vpop.f32.mrf.mxu0
        %v2029 = vadd.f32 %v1958, %v2028
        %v2030 = vpop.f32.mrf.mxu0
        %2031 = vdwg.mxu0
        %v2032 = vmax.f32 %v2029, 0.0
        %v2033 = vld [vmem:[%s13] sm:$0x1]
        %v2034 = vmul.f32 %v2032, %v2033
        %vm2035 = vcmask 516096
        %v2036 = vsel %vm2035, %v2034, 0.0
        %2037 = vadd.xlane.f32.xlu0 %v2036
        %v2038 = vpop.xlane.xlu0 %2037
        %s2039 = sld [smem:[#allocation6]]
        %v2040 = vstv %s2039
        %v2041 = vadd.f32 %v2038, %v2040
        %2042 = vst [vmem:[%s503] sm:$0x1] %v2041
        %p2043 = scmp.lt.s32.totalorder %s38, 3
        %s2044 = scalar_select %p2043, %s38, 3
        %s2045 = scalar_lea.vmem %s15, %s2044
        // Predicated region
        $region77: #{kcat_forward.1} parent=71 // pred_check
          %p2046 = pneg %p344
        $region78: #{kcat_forward.1} parent=71 // pred_check_branch
          %2048 = sbr.rel (%p2046) target = $region80
        $region79: #{kcat_forward.1} parent=71 // pred_region
          _
        $region80: #{kcat_forward.1} parent=71 // pred_fallthru
          _
      $region72: #{kcat_forward.1} parent=5 // pred_fallthru
        _
      %p2049 = scmp.le.s32.totalorder 2, %s33
      // Predicated region
      $region81: #{kcat_forward.1} parent=5 // pred_check
        %p2050 = pneg %p2049
      $region82: #{kcat_forward.1} parent=5 // pred_check_branch
        %2052 = sbr.rel (%p2050) target = $region84
      $region83: #{kcat_forward.1} parent=5 // pred_region
        %s2053 = ssub.s32 %s33, 2
        // Predicated region
        $region85: #{kcat_forward.1} parent=83 // pred_check
          %p2054 = pneg %p350
        $region86: #{kcat_forward.1} parent=83 // pred_check_branch
          %2056 = sbr.rel (%p2054) target = $region88
        $region87: #{kcat_forward.1} parent=83 // pred_region
          %p2057 = scmp.lt.s32.totalorder %s39, 3
          %s2058 = scalar_select %p2057, %s39, 3
          %s2059 = scalar_lea.vmem %s15, %s2058
        $region88: #{kcat_forward.1} parent=83 // pred_fallthru
          _
      $region84: #{kcat_forward.1} parent=5 // pred_fallthru
        _
    $region6: #{kcat_forward.1} parent=1 // loop_footer
      %s37 = sadd.s32 1, %s33
    $region7: #{kcat_forward.1} parent=1 // loop_footer_branch
      %32 = sbr.rel target = $region3
    $region8: #{kcat_forward.1} parent=1 // loop_exit
      _
    %2060 = vsyncpa [#allocation8], 1
    %s2061 = scalar_lea.sflag [#allocation8], 1
    %2062 = vsyncpa %s2061, 1

</llo_original>
